<compile_context>
chip_gen: v6e
topology: v6e:2x2x1
jax: 0.10.0
libtpu: 0.0.40
codegen_flags: <defaults>
</compile_context>

<pallas_src>
import functools

import jax
import jax.numpy as jnp
import numpy as np
from jax import lax
from jax.experimental import pallas as pl
from jax.experimental.pallas import tpu as pltpu


def lstm_head_kernel(xp_ref, whh_ref, w1_ref, b1_ref, w2_ref, b2_ref, out_ref,
                     *, seq_len, hidden_size):
    """Single-invocation kernel: full LSTM recurrence + MLP head.

    xp_ref : (S, Bp, 4H)  precomputed x @ W_ih^T + bias, gates ordered (i,f,o,g)
    whh_ref: (H, 4H)      W_hh^T, gate columns ordered (i,f,o,g)
    w1_ref : (H, H2), b1_ref: (1, H2), w2_ref: (H2, 1), b2_ref: (1, 1)
    out_ref: (Bp, 1)
    """
    H = hidden_size
    Bp = out_ref.shape[0]

    whh = whh_ref[...]                                   # keep weights live across steps

    def step(t, carry):
        h, c = carry
        # recurrent matmul + precomputed input projection (bias already folded in)
        gates = jnp.dot(h, whh, preferred_element_type=jnp.float32) + xp_ref[t]
        # gate order (i, f, o, g): one contiguous sigmoid slab, one tanh slab
        sig = jax.nn.sigmoid(gates[:, :3 * H])           # (Bp, 3H)
        g_g = jnp.tanh(gates[:, 3 * H:])                 # (Bp, H)
        i_g = sig[:, 0 * H:1 * H]
        f_g = sig[:, 1 * H:2 * H]
        o_g = sig[:, 2 * H:3 * H]
        c_new = f_g * c + i_g * g_g
        h_new = o_g * jnp.tanh(c_new)
        return (h_new, c_new)

    h0 = jnp.zeros((Bp, H), jnp.float32)                 # matches torch.zeros init
    c0 = jnp.zeros((Bp, H), jnp.float32)
    h_last, _ = lax.fori_loop(0, seq_len, step, (h0, c0), unroll=True)

    # Fused head: Linear(H -> H/2) -> LeakyReLU(0.01) -> Linear(H/2 -> 1)
    z = jnp.dot(h_last, w1_ref[...], preferred_element_type=jnp.float32) + b1_ref[...]
    z = jnp.where(z > 0, z, jnp.float32(0.01) * z)
    y = jnp.dot(z, w2_ref[...], preferred_element_type=jnp.float32) + b2_ref[...]
    out_ref[...] = y.astype(out_ref.dtype)


def lstm1_forward(x, params, hidden_size=128):
    """x: (B, S, I) float32 (batch_first, like PyTorch). Returns (B, 1)."""
    B, S, I = x.shape
    H = hidden_size
    H2 = H // 2

    # Pad batch up to a multiple of the f32 sublane count (8).
    Bp = max(8, ((B + 7) // 8) * 8)
    x_pad = jnp.pad(x.astype(jnp.float32), ((0, Bp - B), (0, 0), (0, 0)))

    # Reorder PyTorch gate rows (i, f, g, o) -> (i, f, o, g).
    def reorder(w4h):
        return jnp.concatenate(
            [w4h[0 * H:1 * H], w4h[1 * H:2 * H], w4h[3 * H:4 * H], w4h[2 * H:3 * H]],
            axis=0)

    w_ih_r = reorder(params["w_ih"])                     # (4H, I)
    w_hh_r = reorder(params["w_hh"])                     # (4H, H)
    bias_r = reorder((params["b_ih"] + params["b_hh"]).reshape(4 * H, 1)).reshape(1, 1, 4 * H)

    # Precompute input projection for all timesteps: (S, Bp, 4H).
    x_sbi = jnp.transpose(x_pad, (1, 0, 2))              # (S, Bp, I)
    xproj = jnp.einsum("sbi,gi->sbg", x_sbi, w_ih_r) + bias_r
    xproj = xproj.astype(jnp.float32)

    whh_t = w_hh_r.T                                     # (H, 4H)
    w1_t = params["w1"].T                                # (H, H2)
    b1 = params["b1"].reshape(1, H2)
    w2_t = params["w2"].T                                # (H2, 1)
    b2 = params["b2"].reshape(1, 1)

    kernel = functools.partial(lstm_head_kernel, seq_len=S, hidden_size=H)

    out = pl.pallas_call(
        kernel,
        out_shape=jax.ShapeDtypeStruct((Bp, 1), jnp.float32),
        grid_spec=pltpu.PrefetchScalarGridSpec(
            num_scalar_prefetch=0,
            grid=(1,),
            in_specs=[
                pl.BlockSpec((S, Bp, 4 * H), lambda t: (0, 0, 0)),  # xproj
                pl.BlockSpec((H, 4 * H), lambda t: (0, 0)),         # W_hh^T
                pl.BlockSpec((H, H2), lambda t: (0, 0)),            # W1^T
                pl.BlockSpec((1, H2), lambda t: (0, 0)),            # b1
                pl.BlockSpec((H2, 1), lambda t: (0, 0)),            # W2^T
                pl.BlockSpec((1, 1), lambda t: (0, 0)),             # b2
            ],
            out_specs=pl.BlockSpec((Bp, 1), lambda t: (0, 0)),
        ),
        compiler_params=pltpu.CompilerParams(
            dimension_semantics=("arbitrary",)),
    )(xproj, whh_t, w1_t, b1, w2_t, b2)

    return out[:B]                                       # drop batch padding


def init_params(key, input_size=1, hidden_size=128):
    """Deterministic synthetic parameters, PyTorch-style U(-1/sqrt(H), 1/sqrt(H))."""
    H, I, H2 = hidden_size, input_size, hidden_size // 2
    k = 1.0 / np.sqrt(H)
    keys = jax.random.split(key, 8)
    u = lambda kk, shape, bound: jax.random.uniform(
        kk, shape, jnp.float32, minval=-bound, maxval=bound)
    return {
        "w_ih": u(keys[0], (4 * H, I), k),
        "w_hh": u(keys[1], (4 * H, H), k),
        "b_ih": u(keys[2], (4 * H,), k),
        "b_hh": u(keys[3], (4 * H,), k),
        "w1": u(keys[4], (H2, H), k),
        "b1": u(keys[5], (H2,), k),
        "w2": u(keys[6], (1, H2), 1.0 / np.sqrt(H2)),
        "b2": u(keys[7], (1,), 1.0 / np.sqrt(H2)),
    }


def reference_forward(x, params, hidden_size=128):
    """Pure-JAX reference (lax.scan) mirroring torch.nn.LSTM + head."""
    B, S, I = x.shape
    H = hidden_size
    wih_t = params["w_ih"].T
    whh_t = params["w_hh"].T
    b = params["b_ih"] + params["b_hh"]

    def step(carry, x_t):
        h, c = carry
        gates = x_t @ wih_t + h @ whh_t + b
        i = jax.nn.sigmoid(gates[:, 0 * H:1 * H])
        f = jax.nn.sigmoid(gates[:, 1 * H:2 * H])
        g = jnp.tanh(gates[:, 2 * H:3 * H])
        o = jax.nn.sigmoid(gates[:, 3 * H:4 * H])
        c = f * c + i * g
        h = o * jnp.tanh(c)
        return (h, c), None

    h0 = jnp.zeros((B, H), jnp.float32)
    c0 = jnp.zeros((B, H), jnp.float32)
    (h_last, _), _ = jax.lax.scan(step, (h0, c0), jnp.transpose(x, (1, 0, 2)))
    z = h_last @ params["w1"].T + params["b1"]
    z = jnp.where(z > 0, z, 0.01 * z)
    return z @ params["w2"].T + params["b2"]


if __name__ == "__main__":
    B, S, I, H = 2, 8, 1, 128
    key = jax.random.PRNGKey(0)
    k_param, k_x = jax.random.split(key)
    params = init_params(k_param, input_size=I, hidden_size=H)
    x = jax.random.normal(k_x, (B, S, I), jnp.float32)

    out = lstm1_forward(x, params, hidden_size=H)
    out = jax.block_until_ready(out)

    ref = reference_forward(x, params, hidden_size=H)
    np.testing.assert_allclose(np.asarray(out), np.asarray(ref), rtol=1e-5, atol=1e-5)
    assert out.shape == (B, 1)
    print("KERNEL_OK")
</pallas_src>

<mosaic_0001>
module attributes {stable_mosaic.version = 11 : i64} {
  func.func @lstm_head_kernel(%arg0: i32, %arg1: memref<8x8x512xf32, #tpu.memory_space<vmem>>, %arg2: memref<128x512xf32, #tpu.memory_space<vmem>>, %arg3: memref<128x64xf32, #tpu.memory_space<vmem>>, %arg4: memref<1x64xf32, #tpu.memory_space<vmem>>, %arg5: memref<64x1xf32, #tpu.memory_space<vmem>>, %arg6: memref<1x1xf32, #tpu.memory_space<vmem>>, %arg7: memref<8x1xf32, #tpu.memory_space<vmem>>) attributes {dimension_semantics = [#tpu.dimension_semantics<arbitrary>], iteration_bounds = array<i64: 1>, scalar_prefetch = 0 : i64, scratch_operands = 0 : i64, tpu.core_type = #tpu.core_type<tc>, window_params = [{pipeline_mode = #tpu.pipeline_mode<synchronous>, transform_indices = @transform_0, window_bounds = array<i64: 8, 8, 512>}, {pipeline_mode = #tpu.pipeline_mode<synchronous>, transform_indices = @transform_1, window_bounds = array<i64: 128, 512>}, {pipeline_mode = #tpu.pipeline_mode<synchronous>, transform_indices = @transform_2, window_bounds = array<i64: 128, 64>}, {pipeline_mode = #tpu.pipeline_mode<synchronous>, transform_indices = @transform_3, window_bounds = array<i64: 1, 64>}, {pipeline_mode = #tpu.pipeline_mode<synchronous>, transform_indices = @transform_4, window_bounds = array<i64: 64, 1>}, {pipeline_mode = #tpu.pipeline_mode<synchronous>, transform_indices = @transform_5, window_bounds = array<i64: 1, 1>}, {pipeline_mode = #tpu.pipeline_mode<synchronous>, transform_indices = @transform_6, window_bounds = array<i64: 8, 1>}]} {
    %c0 = arith.constant 0 : index
    %c0_0 = arith.constant 0 : index
    %0 = vector.load %arg2[%c0, %c0_0] : memref<128x512xf32, #tpu.memory_space<vmem>>, vector<128x512xf32>
    %cst = arith.constant 0.000000e+00 : f32
    %1 = vector.broadcast %cst : f32 to vector<8x128xf32>
    %cst_1 = arith.constant 0.000000e+00 : f32
    %2 = vector.broadcast %cst_1 : f32 to vector<8x128xf32>
    %c0_i32 = arith.constant 0 : i32
    %cst_2 = arith.constant dense<0.000000e+00> : vector<8x512xf32>
    %3 = tpu.matmul %1, %0, %cst_2 {dimension_numbers = #tpu.dot_dimension_numbers<[1], [0], [0], [1], [0, 0, 1, 1], [], []>} : vector<8x128xf32>, vector<128x512xf32>, vector<8x512xf32> -> vector<8x512xf32>
    %4 = arith.index_cast %c0_i32 : i32 to index
    %c0_3 = arith.constant 0 : index
    %c0_4 = arith.constant 0 : index
    %5 = vector.load %arg1[%4, %c0_3, %c0_4] : memref<8x8x512xf32, #tpu.memory_space<vmem>>, vector<1x8x512xf32>
    %6 = vector.shape_cast %5 : vector<1x8x512xf32> to vector<8x512xf32>
    %7 = arith.addf %3, %6 : vector<8x512xf32>
    %8 = vector.extract_strided_slice %7 {offsets = [0, 0], sizes = [8, 384], strides = [1, 1]} : vector<8x512xf32> to vector<8x384xf32>
    %9 = arith.negf %8 : vector<8x384xf32>
    %10 = math.exp %9 : vector<8x384xf32>
    %cst_5 = arith.constant 1.000000e+00 : f32
    %11 = vector.broadcast %cst_5 : f32 to vector<8x384xf32>
    %12 = arith.addf %11, %10 : vector<8x384xf32>
    %13 = arith.divf %11, %12 : vector<8x384xf32>
    %14 = vector.extract_strided_slice %7 {offsets = [0, 384], sizes = [8, 128], strides = [1, 1]} : vector<8x512xf32> to vector<8x128xf32>
    %15 = math.tanh %14 : vector<8x128xf32>
    %16 = vector.extract_strided_slice %13 {offsets = [0, 0], sizes = [8, 128], strides = [1, 1]} : vector<8x384xf32> to vector<8x128xf32>
    %17 = vector.extract_strided_slice %13 {offsets = [0, 128], sizes = [8, 128], strides = [1, 1]} : vector<8x384xf32> to vector<8x128xf32>
    %18 = vector.extract_strided_slice %13 {offsets = [0, 256], sizes = [8, 128], strides = [1, 1]} : vector<8x384xf32> to vector<8x128xf32>
    %19 = arith.mulf %17, %2 : vector<8x128xf32>
    %20 = arith.mulf %16, %15 : vector<8x128xf32>
    %21 = arith.addf %19, %20 : vector<8x128xf32>
    %22 = math.tanh %21 : vector<8x128xf32>
    %23 = arith.mulf %18, %22 : vector<8x128xf32>
    %c1_i32 = arith.constant 1 : i32
    %cst_6 = arith.constant dense<0.000000e+00> : vector<8x512xf32>
    %24 = tpu.matmul %23, %0, %cst_6 {dimension_numbers = #tpu.dot_dimension_numbers<[1], [0], [0], [1], [0, 0, 1, 1], [], []>} : vector<8x128xf32>, vector<128x512xf32>, vector<8x512xf32> -> vector<8x512xf32>
    %25 = arith.index_cast %c1_i32 : i32 to index
    %c0_7 = arith.constant 0 : index
    %c0_8 = arith.constant 0 : index
    %26 = vector.load %arg1[%25, %c0_7, %c0_8] : memref<8x8x512xf32, #tpu.memory_space<vmem>>, vector<1x8x512xf32>
    %27 = vector.shape_cast %26 : vector<1x8x512xf32> to vector<8x512xf32>
    %28 = arith.addf %24, %27 : vector<8x512xf32>
    %29 = vector.extract_strided_slice %28 {offsets = [0, 0], sizes = [8, 384], strides = [1, 1]} : vector<8x512xf32> to vector<8x384xf32>
    %30 = arith.negf %29 : vector<8x384xf32>
    %31 = math.exp %30 : vector<8x384xf32>
    %cst_9 = arith.constant 1.000000e+00 : f32
    %32 = vector.broadcast %cst_9 : f32 to vector<8x384xf32>
    %33 = arith.addf %32, %31 : vector<8x384xf32>
    %34 = arith.divf %32, %33 : vector<8x384xf32>
    %35 = vector.extract_strided_slice %28 {offsets = [0, 384], sizes = [8, 128], strides = [1, 1]} : vector<8x512xf32> to vector<8x128xf32>
    %36 = math.tanh %35 : vector<8x128xf32>
    %37 = vector.extract_strided_slice %34 {offsets = [0, 0], sizes = [8, 128], strides = [1, 1]} : vector<8x384xf32> to vector<8x128xf32>
    %38 = vector.extract_strided_slice %34 {offsets = [0, 128], sizes = [8, 128], strides = [1, 1]} : vector<8x384xf32> to vector<8x128xf32>
    %39 = vector.extract_strided_slice %34 {offsets = [0, 256], sizes = [8, 128], strides = [1, 1]} : vector<8x384xf32> to vector<8x128xf32>
    %40 = arith.mulf %38, %21 : vector<8x128xf32>
    %41 = arith.mulf %37, %36 : vector<8x128xf32>
    %42 = arith.addf %40, %41 : vector<8x128xf32>
    %43 = math.tanh %42 : vector<8x128xf32>
    %44 = arith.mulf %39, %43 : vector<8x128xf32>
    %c2_i32 = arith.constant 2 : i32
    %cst_10 = arith.constant dense<0.000000e+00> : vector<8x512xf32>
    %45 = tpu.matmul %44, %0, %cst_10 {dimension_numbers = #tpu.dot_dimension_numbers<[1], [0], [0], [1], [0, 0, 1, 1], [], []>} : vector<8x128xf32>, vector<128x512xf32>, vector<8x512xf32> -> vector<8x512xf32>
    %46 = arith.index_cast %c2_i32 : i32 to index
    %c0_11 = arith.constant 0 : index
    %c0_12 = arith.constant 0 : index
    %47 = vector.load %arg1[%46, %c0_11, %c0_12] : memref<8x8x512xf32, #tpu.memory_space<vmem>>, vector<1x8x512xf32>
    %48 = vector.shape_cast %47 : vector<1x8x512xf32> to vector<8x512xf32>
    %49 = arith.addf %45, %48 : vector<8x512xf32>
    %50 = vector.extract_strided_slice %49 {offsets = [0, 0], sizes = [8, 384], strides = [1, 1]} : vector<8x512xf32> to vector<8x384xf32>
    %51 = arith.negf %50 : vector<8x384xf32>
    %52 = math.exp %51 : vector<8x384xf32>
    %cst_13 = arith.constant 1.000000e+00 : f32
    %53 = vector.broadcast %cst_13 : f32 to vector<8x384xf32>
    %54 = arith.addf %53, %52 : vector<8x384xf32>
    %55 = arith.divf %53, %54 : vector<8x384xf32>
    %56 = vector.extract_strided_slice %49 {offsets = [0, 384], sizes = [8, 128], strides = [1, 1]} : vector<8x512xf32> to vector<8x128xf32>
    %57 = math.tanh %56 : vector<8x128xf32>
    %58 = vector.extract_strided_slice %55 {offsets = [0, 0], sizes = [8, 128], strides = [1, 1]} : vector<8x384xf32> to vector<8x128xf32>
    %59 = vector.extract_strided_slice %55 {offsets = [0, 128], sizes = [8, 128], strides = [1, 1]} : vector<8x384xf32> to vector<8x128xf32>
    %60 = vector.extract_strided_slice %55 {offsets = [0, 256], sizes = [8, 128], strides = [1, 1]} : vector<8x384xf32> to vector<8x128xf32>
    %61 = arith.mulf %59, %42 : vector<8x128xf32>
    %62 = arith.mulf %58, %57 : vector<8x128xf32>
    %63 = arith.addf %61, %62 : vector<8x128xf32>
    %64 = math.tanh %63 : vector<8x128xf32>
    %65 = arith.mulf %60, %64 : vector<8x128xf32>
    %c3_i32 = arith.constant 3 : i32
    %cst_14 = arith.constant dense<0.000000e+00> : vector<8x512xf32>
    %66 = tpu.matmul %65, %0, %cst_14 {dimension_numbers = #tpu.dot_dimension_numbers<[1], [0], [0], [1], [0, 0, 1, 1], [], []>} : vector<8x128xf32>, vector<128x512xf32>, vector<8x512xf32> -> vector<8x512xf32>
    %67 = arith.index_cast %c3_i32 : i32 to index
    %c0_15 = arith.constant 0 : index
    %c0_16 = arith.constant 0 : index
    %68 = vector.load %arg1[%67, %c0_15, %c0_16] : memref<8x8x512xf32, #tpu.memory_space<vmem>>, vector<1x8x512xf32>
    %69 = vector.shape_cast %68 : vector<1x8x512xf32> to vector<8x512xf32>
    %70 = arith.addf %66, %69 : vector<8x512xf32>
    %71 = vector.extract_strided_slice %70 {offsets = [0, 0], sizes = [8, 384], strides = [1, 1]} : vector<8x512xf32> to vector<8x384xf32>
    %72 = arith.negf %71 : vector<8x384xf32>
    %73 = math.exp %72 : vector<8x384xf32>
    %cst_17 = arith.constant 1.000000e+00 : f32
    %74 = vector.broadcast %cst_17 : f32 to vector<8x384xf32>
    %75 = arith.addf %74, %73 : vector<8x384xf32>
    %76 = arith.divf %74, %75 : vector<8x384xf32>
    %77 = vector.extract_strided_slice %70 {offsets = [0, 384], sizes = [8, 128], strides = [1, 1]} : vector<8x512xf32> to vector<8x128xf32>
    %78 = math.tanh %77 : vector<8x128xf32>
    %79 = vector.extract_strided_slice %76 {offsets = [0, 0], sizes = [8, 128], strides = [1, 1]} : vector<8x384xf32> to vector<8x128xf32>
    %80 = vector.extract_strided_slice %76 {offsets = [0, 128], sizes = [8, 128], strides = [1, 1]} : vector<8x384xf32> to vector<8x128xf32>
    %81 = vector.extract_strided_slice %76 {offsets = [0, 256], sizes = [8, 128], strides = [1, 1]} : vector<8x384xf32> to vector<8x128xf32>
    %82 = arith.mulf %80, %63 : vector<8x128xf32>
    %83 = arith.mulf %79, %78 : vector<8x128xf32>
    %84 = arith.addf %82, %83 : vector<8x128xf32>
    %85 = math.tanh %84 : vector<8x128xf32>
    %86 = arith.mulf %81, %85 : vector<8x128xf32>
    %c4_i32 = arith.constant 4 : i32
    %cst_18 = arith.constant dense<0.000000e+00> : vector<8x512xf32>
    %87 = tpu.matmul %86, %0, %cst_18 {dimension_numbers = #tpu.dot_dimension_numbers<[1], [0], [0], [1], [0, 0, 1, 1], [], []>} : vector<8x128xf32>, vector<128x512xf32>, vector<8x512xf32> -> vector<8x512xf32>
    %88 = arith.index_cast %c4_i32 : i32 to index
    %c0_19 = arith.constant 0 : index
    %c0_20 = arith.constant 0 : index
    %89 = vector.load %arg1[%88, %c0_19, %c0_20] : memref<8x8x512xf32, #tpu.memory_space<vmem>>, vector<1x8x512xf32>
    %90 = vector.shape_cast %89 : vector<1x8x512xf32> to vector<8x512xf32>
    %91 = arith.addf %87, %90 : vector<8x512xf32>
    %92 = vector.extract_strided_slice %91 {offsets = [0, 0], sizes = [8, 384], strides = [1, 1]} : vector<8x512xf32> to vector<8x384xf32>
    %93 = arith.negf %92 : vector<8x384xf32>
    %94 = math.exp %93 : vector<8x384xf32>
    %cst_21 = arith.constant 1.000000e+00 : f32
    %95 = vector.broadcast %cst_21 : f32 to vector<8x384xf32>
    %96 = arith.addf %95, %94 : vector<8x384xf32>
    %97 = arith.divf %95, %96 : vector<8x384xf32>
    %98 = vector.extract_strided_slice %91 {offsets = [0, 384], sizes = [8, 128], strides = [1, 1]} : vector<8x512xf32> to vector<8x128xf32>
    %99 = math.tanh %98 : vector<8x128xf32>
    %100 = vector.extract_strided_slice %97 {offsets = [0, 0], sizes = [8, 128], strides = [1, 1]} : vector<8x384xf32> to vector<8x128xf32>
    %101 = vector.extract_strided_slice %97 {offsets = [0, 128], sizes = [8, 128], strides = [1, 1]} : vector<8x384xf32> to vector<8x128xf32>
    %102 = vector.extract_strided_slice %97 {offsets = [0, 256], sizes = [8, 128], strides = [1, 1]} : vector<8x384xf32> to vector<8x128xf32>
    %103 = arith.mulf %101, %84 : vector<8x128xf32>
    %104 = arith.mulf %100, %99 : vector<8x128xf32>
    %105 = arith.addf %103, %104 : vector<8x128xf32>
    %106 = math.tanh %105 : vector<8x128xf32>
    %107 = arith.mulf %102, %106 : vector<8x128xf32>
    %c5_i32 = arith.constant 5 : i32
    %cst_22 = arith.constant dense<0.000000e+00> : vector<8x512xf32>
    %108 = tpu.matmul %107, %0, %cst_22 {dimension_numbers = #tpu.dot_dimension_numbers<[1], [0], [0], [1], [0, 0, 1, 1], [], []>} : vector<8x128xf32>, vector<128x512xf32>, vector<8x512xf32> -> vector<8x512xf32>
    %109 = arith.index_cast %c5_i32 : i32 to index
    %c0_23 = arith.constant 0 : index
    %c0_24 = arith.constant 0 : index
    %110 = vector.load %arg1[%109, %c0_23, %c0_24] : memref<8x8x512xf32, #tpu.memory_space<vmem>>, vector<1x8x512xf32>
    %111 = vector.shape_cast %110 : vector<1x8x512xf32> to vector<8x512xf32>
    %112 = arith.addf %108, %111 : vector<8x512xf32>
    %113 = vector.extract_strided_slice %112 {offsets = [0, 0], sizes = [8, 384], strides = [1, 1]} : vector<8x512xf32> to vector<8x384xf32>
    %114 = arith.negf %113 : vector<8x384xf32>
    %115 = math.exp %114 : vector<8x384xf32>
    %cst_25 = arith.constant 1.000000e+00 : f32
    %116 = vector.broadcast %cst_25 : f32 to vector<8x384xf32>
    %117 = arith.addf %116, %115 : vector<8x384xf32>
    %118 = arith.divf %116, %117 : vector<8x384xf32>
    %119 = vector.extract_strided_slice %112 {offsets = [0, 384], sizes = [8, 128], strides = [1, 1]} : vector<8x512xf32> to vector<8x128xf32>
    %120 = math.tanh %119 : vector<8x128xf32>
    %121 = vector.extract_strided_slice %118 {offsets = [0, 0], sizes = [8, 128], strides = [1, 1]} : vector<8x384xf32> to vector<8x128xf32>
    %122 = vector.extract_strided_slice %118 {offsets = [0, 128], sizes = [8, 128], strides = [1, 1]} : vector<8x384xf32> to vector<8x128xf32>
    %123 = vector.extract_strided_slice %118 {offsets = [0, 256], sizes = [8, 128], strides = [1, 1]} : vector<8x384xf32> to vector<8x128xf32>
    %124 = arith.mulf %122, %105 : vector<8x128xf32>
    %125 = arith.mulf %121, %120 : vector<8x128xf32>
    %126 = arith.addf %124, %125 : vector<8x128xf32>
    %127 = math.tanh %126 : vector<8x128xf32>
    %128 = arith.mulf %123, %127 : vector<8x128xf32>
    %c6_i32 = arith.constant 6 : i32
    %cst_26 = arith.constant dense<0.000000e+00> : vector<8x512xf32>
    %129 = tpu.matmul %128, %0, %cst_26 {dimension_numbers = #tpu.dot_dimension_numbers<[1], [0], [0], [1], [0, 0, 1, 1], [], []>} : vector<8x128xf32>, vector<128x512xf32>, vector<8x512xf32> -> vector<8x512xf32>
    %130 = arith.index_cast %c6_i32 : i32 to index
    %c0_27 = arith.constant 0 : index
    %c0_28 = arith.constant 0 : index
    %131 = vector.load %arg1[%130, %c0_27, %c0_28] : memref<8x8x512xf32, #tpu.memory_space<vmem>>, vector<1x8x512xf32>
    %132 = vector.shape_cast %131 : vector<1x8x512xf32> to vector<8x512xf32>
    %133 = arith.addf %129, %132 : vector<8x512xf32>
    %134 = vector.extract_strided_slice %133 {offsets = [0, 0], sizes = [8, 384], strides = [1, 1]} : vector<8x512xf32> to vector<8x384xf32>
    %135 = arith.negf %134 : vector<8x384xf32>
    %136 = math.exp %135 : vector<8x384xf32>
    %cst_29 = arith.constant 1.000000e+00 : f32
    %137 = vector.broadcast %cst_29 : f32 to vector<8x384xf32>
    %138 = arith.addf %137, %136 : vector<8x384xf32>
    %139 = arith.divf %137, %138 : vector<8x384xf32>
    %140 = vector.extract_strided_slice %133 {offsets = [0, 384], sizes = [8, 128], strides = [1, 1]} : vector<8x512xf32> to vector<8x128xf32>
    %141 = math.tanh %140 : vector<8x128xf32>
    %142 = vector.extract_strided_slice %139 {offsets = [0, 0], sizes = [8, 128], strides = [1, 1]} : vector<8x384xf32> to vector<8x128xf32>
    %143 = vector.extract_strided_slice %139 {offsets = [0, 128], sizes = [8, 128], strides = [1, 1]} : vector<8x384xf32> to vector<8x128xf32>
    %144 = vector.extract_strided_slice %139 {offsets = [0, 256], sizes = [8, 128], strides = [1, 1]} : vector<8x384xf32> to vector<8x128xf32>
    %145 = arith.mulf %143, %126 : vector<8x128xf32>
    %146 = arith.mulf %142, %141 : vector<8x128xf32>
    %147 = arith.addf %145, %146 : vector<8x128xf32>
    %148 = math.tanh %147 : vector<8x128xf32>
    %149 = arith.mulf %144, %148 : vector<8x128xf32>
    %c7_i32 = arith.constant 7 : i32
    %cst_30 = arith.constant dense<0.000000e+00> : vector<8x512xf32>
    %150 = tpu.matmul %149, %0, %cst_30 {dimension_numbers = #tpu.dot_dimension_numbers<[1], [0], [0], [1], [0, 0, 1, 1], [], []>} : vector<8x128xf32>, vector<128x512xf32>, vector<8x512xf32> -> vector<8x512xf32>
    %151 = arith.index_cast %c7_i32 : i32 to index
    %c0_31 = arith.constant 0 : index
    %c0_32 = arith.constant 0 : index
    %152 = vector.load %arg1[%151, %c0_31, %c0_32] : memref<8x8x512xf32, #tpu.memory_space<vmem>>, vector<1x8x512xf32>
    %153 = vector.shape_cast %152 : vector<1x8x512xf32> to vector<8x512xf32>
    %154 = arith.addf %150, %153 : vector<8x512xf32>
    %155 = vector.extract_strided_slice %154 {offsets = [0, 0], sizes = [8, 384], strides = [1, 1]} : vector<8x512xf32> to vector<8x384xf32>
    %156 = arith.negf %155 : vector<8x384xf32>
    %157 = math.exp %156 : vector<8x384xf32>
    %cst_33 = arith.constant 1.000000e+00 : f32
    %158 = vector.broadcast %cst_33 : f32 to vector<8x384xf32>
    %159 = arith.addf %158, %157 : vector<8x384xf32>
    %160 = arith.divf %158, %159 : vector<8x384xf32>
    %161 = vector.extract_strided_slice %154 {offsets = [0, 384], sizes = [8, 128], strides = [1, 1]} : vector<8x512xf32> to vector<8x128xf32>
    %162 = math.tanh %161 : vector<8x128xf32>
    %163 = vector.extract_strided_slice %160 {offsets = [0, 0], sizes = [8, 128], strides = [1, 1]} : vector<8x384xf32> to vector<8x128xf32>
    %164 = vector.extract_strided_slice %160 {offsets = [0, 128], sizes = [8, 128], strides = [1, 1]} : vector<8x384xf32> to vector<8x128xf32>
    %165 = vector.extract_strided_slice %160 {offsets = [0, 256], sizes = [8, 128], strides = [1, 1]} : vector<8x384xf32> to vector<8x128xf32>
    %166 = arith.mulf %164, %147 : vector<8x128xf32>
    %167 = arith.mulf %163, %162 : vector<8x128xf32>
    %168 = arith.addf %166, %167 : vector<8x128xf32>
    %169 = math.tanh %168 : vector<8x128xf32>
    %170 = arith.mulf %165, %169 : vector<8x128xf32>
    %c8_i32 = arith.constant 8 : i32
    %c0_34 = arith.constant 0 : index
    %c0_35 = arith.constant 0 : index
    %171 = vector.load %arg3[%c0_34, %c0_35] : memref<128x64xf32, #tpu.memory_space<vmem>>, vector<128x64xf32>
    %cst_36 = arith.constant dense<0.000000e+00> : vector<8x64xf32>
    %172 = tpu.matmul %170, %171, %cst_36 {dimension_numbers = #tpu.dot_dimension_numbers<[1], [0], [0], [1], [0, 0, 1, 1], [], []>} : vector<8x128xf32>, vector<128x64xf32>, vector<8x64xf32> -> vector<8x64xf32>
    %c0_37 = arith.constant 0 : index
    %c0_38 = arith.constant 0 : index
    %173 = vector.load %arg4[%c0_37, %c0_38] : memref<1x64xf32, #tpu.memory_space<vmem>>, vector<1x64xf32>
    %174 = vector.broadcast %173 : vector<1x64xf32> to vector<8x64xf32>
    %175 = arith.addf %172, %174 : vector<8x64xf32>
    %cst_39 = arith.constant 0.000000e+00 : f32
    %176 = vector.broadcast %cst_39 : f32 to vector<8x64xf32>
    %177 = arith.cmpf ogt, %175, %176 : vector<8x64xf32>
    %cst_40 = arith.constant 0.00999999977 : f32
    %178 = vector.broadcast %cst_40 : f32 to vector<8x64xf32>
    %179 = arith.mulf %178, %175 : vector<8x64xf32>
    %180 = arith.select %177, %175, %179 : vector<8x64xi1>, vector<8x64xf32>
    %c0_41 = arith.constant 0 : index
    %c0_42 = arith.constant 0 : index
    %181 = vector.load %arg5[%c0_41, %c0_42] : memref<64x1xf32, #tpu.memory_space<vmem>>, vector<64x1xf32>
    %cst_43 = arith.constant dense<0.000000e+00> : vector<8x1xf32>
    %182 = tpu.matmul %180, %181, %cst_43 {dimension_numbers = #tpu.dot_dimension_numbers<[1], [0], [0], [1], [0, 0, 1, 1], [], []>} : vector<8x64xf32>, vector<64x1xf32>, vector<8x1xf32> -> vector<8x1xf32>
    %c0_44 = arith.constant 0 : index
    %c0_45 = arith.constant 0 : index
    %183 = vector.load %arg6[%c0_44, %c0_45] : memref<1x1xf32, #tpu.memory_space<vmem>>, vector<1x1xf32>
    %184 = vector.broadcast %183 : vector<1x1xf32> to vector<8x1xf32>
    %185 = arith.addf %182, %184 : vector<8x1xf32>
    %c0_46 = arith.constant 0 : index
    %c0_47 = arith.constant 0 : index
    %186 = vector.load %arg7[%c0_46, %c0_47] : memref<8x1xf32, #tpu.memory_space<vmem>>, vector<8x1xf32>
    tpu.vector_store %arg7[%c0_46, %c0_47], %185 {strides = array<i32>} : memref<8x1xf32, #tpu.memory_space<vmem>>, vector<8x1xf32>,
    return
  }
  func.func @transform_0(%arg0: i32) -> (i32, i32, i32) {
    %c0_i32 = arith.constant 0 : i32
    %c0_i32_0 = arith.constant 0 : i32
    %c0_i32_1 = arith.constant 0 : i32
    %c0_i32_2 = arith.constant 0 : i32
    return %c0_i32, %c0_i32_0, %c0_i32_1 : i32, i32, i32
  }
  func.func @transform_1(%arg0: i32) -> (i32, i32) {
    %c0_i32 = arith.constant 0 : i32
    %c0_i32_0 = arith.constant 0 : i32
    %c0_i32_1 = arith.constant 0 : i32
    return %c0_i32, %c0_i32_0 : i32, i32
  }
  func.func @transform_2(%arg0: i32) -> (i32, i32) {
    %c0_i32 = arith.constant 0 : i32
    %c0_i32_0 = arith.constant 0 : i32
    %c0_i32_1 = arith.constant 0 : i32
    return %c0_i32, %c0_i32_0 : i32, i32
  }
  func.func @transform_3(%arg0: i32) -> (i32, i32) {
    %c0_i32 = arith.constant 0 : i32
    %c0_i32_0 = arith.constant 0 : i32
    %c0_i32_1 = arith.constant 0 : i32
    return %c0_i32, %c0_i32_0 : i32, i32
  }
  func.func @transform_4(%arg0: i32) -> (i32, i32) {
    %c0_i32 = arith.constant 0 : i32
    %c0_i32_0 = arith.constant 0 : i32
    %c0_i32_1 = arith.constant 0 : i32
    return %c0_i32, %c0_i32_0 : i32, i32
  }
  func.func @transform_5(%arg0: i32) -> (i32, i32) {
    %c0_i32 = arith.constant 0 : i32
    %c0_i32_0 = arith.constant 0 : i32
    %c0_i32_1 = arith.constant 0 : i32
    return %c0_i32, %c0_i32_0 : i32, i32
  }
  func.func @transform_6(%arg0: i32) -> (i32, i32) {
    %c0_i32 = arith.constant 0 : i32
    %c0_i32_0 = arith.constant 0 : i32
    %c0_i32_1 = arith.constant 0 : i32
    return %c0_i32, %c0_i32_0 : i32, i32
  }
}

</mosaic_0001>

<llo_original>
// kernel: tpu_custom_call.1
$region0: #{tpu_custom_call.1}
  #allocation0 [shape = 'u32[]', space=smem, size = 0x4, offset = 0x4, fixed_abs, tag = 'smem constant byte address 0x4 - core index']
  #allocation1 [shape = 'u32[144,128]{1,0:T(1,128)}', space=vmem, size = 0x12000, scoped, tag = 'internal scratch']
  #allocation2 [shape = 'f32[1,1]{1,0:T(1,128)S(1)}', space=vmem, size = 0x200, scoped, tag = 'scoped memory for tpu_custom_call.1']
  %s0 = inlined_call_operand.vmem [shape: f32[8,8,512], index: 0, kind: input, shape index: {}]
  %s1 = inlined_call_operand.hbm [shape: f32[128,512], index: 1, kind: input, shape index: {}]
  %s2 = inlined_call_operand.vmem [shape: f32[128,64], index: 2, kind: input, shape index: {}]
  %s3 = inlined_call_operand.vmem [shape: f32[1,64], index: 3, kind: input, shape index: {}]
  %s4 = inlined_call_operand.vmem [shape: f32[64,1], index: 4, kind: input, shape index: {}]
  %s5 = inlined_call_operand.<no memory space> [shape: f32[1,1], index: 5, kind: input, shape index: {}]
  %s6 = inlined_call_operand.vmem [shape: f32[8,1], index: 6, kind: output, shape index: {}]
  %s7 = sld [smem:[#allocation0]]
  $region38: #{tpu_custom_call.1} parent=0
    _
  %s9 = ssub.s32 1, %s7
  %s10 = scalar_select 0, %s9, %s7
  %v11 = vstv %s5
  %12 = vst [vmem:[#allocation2] sm:$0x1] %v11
  $region1: #{tpu_custom_call.1} parent=0
    #allocation3 [shape = 'u8[262144]{0}', space=vmem, size = 0x40000, scoped, tag = 'input window, operand 1, single buffered']
    #allocation4 [shape = 's32[1]{0}', space=sflag, size = 0x4, scoped, tag = 'scoped memory for tpu_custom_call.1']
    %13 = vsyncpa [#allocation4], 0
    // Predicated region
    $region2: #{tpu_custom_call.1} parent=1 // pred_check
      _
    $region3: #{tpu_custom_call.1} parent=1 // pred_check_branch
      %15 = sbr.rel (0) target = $region5
    $region4: #{tpu_custom_call.1} parent=1 // pred_region
      _
    $region5: #{tpu_custom_call.1} parent=1 // pred_fallthru
      _
    // Predicated region
    $region6: #{tpu_custom_call.1} parent=1 // pred_check
      _
    $region7: #{tpu_custom_call.1} parent=1 // pred_check_branch
      %17 = sbr.rel (0) target = $region9
    $region8: #{tpu_custom_call.1} parent=1 // pred_region
      %s19 = ssub.s32 8192, 8192
      %20 = vsyncadd [#allocation4], %s19
      %s21 = sshll.u32 [#allocation3], 4
      %s22 = int_to_ptr.vmem [resolvable:$true] %s21
      %27 = dma.hbm_to_vmem [thread:$0]  %s1, 8192, %s22, [#allocation4], 512, 512, 32
    $region9: #{tpu_custom_call.1} parent=1 // pred_fallthru
      _
    // Predicated region
    $region10: #{tpu_custom_call.1} parent=1 // pred_check
      _
    $region11: #{tpu_custom_call.1} parent=1 // pred_check_branch
      %29 = sbr.rel (0) target = $region13
    $region12: #{tpu_custom_call.1} parent=1 // pred_region
      _
    $region13: #{tpu_custom_call.1} parent=1 // pred_fallthru
      _
    // Predicated region
    $region14: #{tpu_custom_call.1} parent=1 // pred_check
      _
    $region15: #{tpu_custom_call.1} parent=1 // pred_check_branch
      %31 = sbr.rel (0) target = $region17
    $region16: #{tpu_custom_call.1} parent=1 // pred_region
      _
    $region17: #{tpu_custom_call.1} parent=1 // pred_fallthru
      _
    // Predicated region
    $region18: #{tpu_custom_call.1} parent=1 // pred_check
      _
    $region19: #{tpu_custom_call.1} parent=1 // pred_check_branch
      %33 = sbr.rel (0) target = $region21
    $region20: #{tpu_custom_call.1} parent=1 // pred_region
      _
    $region21: #{tpu_custom_call.1} parent=1 // pred_fallthru
      _
    // Predicated region
    $region22: #{tpu_custom_call.1} parent=1 // pred_check
      _
    $region23: #{tpu_custom_call.1} parent=1 // pred_check_branch
      %35 = sbr.rel (0) target = $region25
    $region24: #{tpu_custom_call.1} parent=1 // pred_region
      _
    $region25: #{tpu_custom_call.1} parent=1 // pred_fallthru
      _
    // Predicated region
    $region26: #{tpu_custom_call.1} parent=1 // pred_check
      _
    $region27: #{tpu_custom_call.1} parent=1 // pred_check_branch
      %37 = sbr.rel (0) target = $region29
    $region28: #{tpu_custom_call.1} parent=1 // pred_region
      %38 = dma.done [#allocation4], 8192
    $region29: #{tpu_custom_call.1} parent=1 // pred_fallthru
      _
    %v39 = vld [vmem:[#allocation3] sm:$0xff]
    %v40 = vld [vmem:[#allocation3 + $0x8] sm:$0xff]
    %v41 = vld [vmem:[#allocation3 + $0x10] sm:$0xff]
    %v42 = vld [vmem:[#allocation3 + $0x18] sm:$0xff]
    %v43 = vld [vmem:[#allocation3 + $0x20] sm:$0xff]
    %v44 = vld [vmem:[#allocation3 + $0x28] sm:$0xff]
    %v45 = vld [vmem:[#allocation3 + $0x30] sm:$0xff]
    %v46 = vld [vmem:[#allocation3 + $0x38] sm:$0xff]
    %v47 = vld [vmem:[#allocation3 + $0x40] sm:$0xff]
    %v48 = vld [vmem:[#allocation3 + $0x48] sm:$0xff]
    %v49 = vld [vmem:[#allocation3 + $0x50] sm:$0xff]
    %v50 = vld [vmem:[#allocation3 + $0x58] sm:$0xff]
    %v51 = vld [vmem:[#allocation3 + $0x60] sm:$0xff]
    %v52 = vld [vmem:[#allocation3 + $0x68] sm:$0xff]
    %v53 = vld [vmem:[#allocation3 + $0x70] sm:$0xff]
    %v54 = vld [vmem:[#allocation3 + $0x78] sm:$0xff]
    %v55 = vld [vmem:[#allocation3 + $0x80] sm:$0xff]
    %v56 = vld [vmem:[#allocation3 + $0x88] sm:$0xff]
    %v57 = vld [vmem:[#allocation3 + $0x90] sm:$0xff]
    %v58 = vld [vmem:[#allocation3 + $0x98] sm:$0xff]
    %v59 = vld [vmem:[#allocation3 + $0xa0] sm:$0xff]
    %v60 = vld [vmem:[#allocation3 + $0xa8] sm:$0xff]
    %v61 = vld [vmem:[#allocation3 + $0xb0] sm:$0xff]
    %v62 = vld [vmem:[#allocation3 + $0xb8] sm:$0xff]
    %v63 = vld [vmem:[#allocation3 + $0xc0] sm:$0xff]
    %v64 = vld [vmem:[#allocation3 + $0xc8] sm:$0xff]
    %v65 = vld [vmem:[#allocation3 + $0xd0] sm:$0xff]
    %v66 = vld [vmem:[#allocation3 + $0xd8] sm:$0xff]
    %v67 = vld [vmem:[#allocation3 + $0xe0] sm:$0xff]
    %v68 = vld [vmem:[#allocation3 + $0xe8] sm:$0xff]
    %v69 = vld [vmem:[#allocation3 + $0xf0] sm:$0xff]
    %v70 = vld [vmem:[#allocation3 + $0xf8] sm:$0xff]
    %v71 = vld [vmem:[#allocation3 + $0x100] sm:$0xff]
    %v72 = vld [vmem:[#allocation3 + $0x108] sm:$0xff]
    %v73 = vld [vmem:[#allocation3 + $0x110] sm:$0xff]
    %v74 = vld [vmem:[#allocation3 + $0x118] sm:$0xff]
    %v75 = vld [vmem:[#allocation3 + $0x120] sm:$0xff]
    %v76 = vld [vmem:[#allocation3 + $0x128] sm:$0xff]
    %v77 = vld [vmem:[#allocation3 + $0x130] sm:$0xff]
    %v78 = vld [vmem:[#allocation3 + $0x138] sm:$0xff]
    %v79 = vld [vmem:[#allocation3 + $0x140] sm:$0xff]
    %v80 = vld [vmem:[#allocation3 + $0x148] sm:$0xff]
    %v81 = vld [vmem:[#allocation3 + $0x150] sm:$0xff]
    %v82 = vld [vmem:[#allocation3 + $0x158] sm:$0xff]
    %v83 = vld [vmem:[#allocation3 + $0x160] sm:$0xff]
    %v84 = vld [vmem:[#allocation3 + $0x168] sm:$0xff]
    %v85 = vld [vmem:[#allocation3 + $0x170] sm:$0xff]
    %v86 = vld [vmem:[#allocation3 + $0x178] sm:$0xff]
    %v87 = vld [vmem:[#allocation3 + $0x180] sm:$0xff]
    %v88 = vld [vmem:[#allocation3 + $0x188] sm:$0xff]
    %v89 = vld [vmem:[#allocation3 + $0x190] sm:$0xff]
    %v90 = vld [vmem:[#allocation3 + $0x198] sm:$0xff]
    %v91 = vld [vmem:[#allocation3 + $0x1a0] sm:$0xff]
    %v92 = vld [vmem:[#allocation3 + $0x1a8] sm:$0xff]
    %v93 = vld [vmem:[#allocation3 + $0x1b0] sm:$0xff]
    %v94 = vld [vmem:[#allocation3 + $0x1b8] sm:$0xff]
    %v95 = vld [vmem:[#allocation3 + $0x1c0] sm:$0xff]
    %v96 = vld [vmem:[#allocation3 + $0x1c8] sm:$0xff]
    %v97 = vld [vmem:[#allocation3 + $0x1d0] sm:$0xff]
    %v98 = vld [vmem:[#allocation3 + $0x1d8] sm:$0xff]
    %v99 = vld [vmem:[#allocation3 + $0x1e0] sm:$0xff]
    %v100 = vld [vmem:[#allocation3 + $0x1e8] sm:$0xff]
    %v101 = vld [vmem:[#allocation3 + $0x1f0] sm:$0xff]
    %v102 = vld [vmem:[#allocation3 + $0x1f8] sm:$0xff]
    %v103 = vld [vmem:[%s0] sm:$0xff]
    %v104 = vld [vmem:[%s0 + $0x8] sm:$0xff]
    %v105 = vld [vmem:[%s0 + $0x10] sm:$0xff]
    %v106 = vld [vmem:[%s0 + $0x18] sm:$0xff]
    %107 = vmatprep.subr.mxu0 %v100
    %108 = vmatpush1.msra.mxu0 %v99
    %109 = vmatprep.subr.mxu0 %v96
    %110 = vmatpush1.msra.mxu0 %v95
    %111 = vmatprep.subr.mxu0 %v92
    %112 = vmatpush1.msra.mxu0 %v91
    %113 = vmatprep.subr.mxu0 %v88
    %114 = vmatpush1.msra.mxu0 %v87
    %115 = vmatprep.subr.mxu0 %v84
    %116 = vmatpush1.msra.mxu0 %v83
    %117 = vmatprep.subr.mxu0 %v80
    %118 = vmatpush1.msra.mxu0 %v79
    %119 = vmatprep.subr.mxu0 %v76
    %120 = vmatpush1.msra.mxu0 %v75
    %121 = vmatprep.subr.mxu0 %v72
    %122 = vmatpush1.msra.mxu0 %v71
    %123 = vmatprep.subr.mxu0 %v68
    %124 = vmatpush1.msra.mxu0 %v67
    %125 = vmatprep.subr.mxu0 %v64
    %126 = vmatpush1.msra.mxu0 %v63
    %127 = vmatprep.subr.mxu0 %v60
    %128 = vmatpush1.msra.mxu0 %v59
    %129 = vmatprep.subr.mxu0 %v56
    %130 = vmatpush1.msra.mxu0 %v55
    %131 = vmatprep.subr.mxu0 %v52
    %132 = vmatpush1.msra.mxu0 %v51
    %133 = vmatprep.subr.mxu0 %v48
    %134 = vmatpush1.msra.mxu0 %v47
    %135 = vmatprep.subr.mxu0 %v44
    %136 = vmatpush1.msra.mxu0 %v43
    %137 = vmatprep.subr.mxu0 %v40
    %138 = vmatpush1.msra.mxu0 %v39
    %139 = vmatprep.subr.mxu0 0.0
    %140 = vmatpush2.msra.mxu0 0.0
    %141 = vmatprep.subr.mxu0 0.0
    %142 = vmatpush2.msra.mxu0 0.0
    %143 = vmatprep.subr.mxu0 0.0
    %144 = vmatpush2.msra.mxu0 0.0
    %145 = vmatprep.subr.mxu0 0.0
    %146 = vmatpush2.msra.mxu0 0.0
    %147 = vmatprep.subr.mxu0 0.0
    %148 = vmatpush2.msra.mxu0 0.0
    %149 = vmatprep.subr.mxu0 0.0
    %150 = vmatpush2.msra.mxu0 0.0
    %151 = vmatprep.subr.mxu0 0.0
    %152 = vmatpush2.msra.mxu0 0.0
    %153 = vmatprep.subr.mxu0 0.0
    %154 = vmatpush2.msra.mxu0 0.0
    %155 = vmatprep.subr.mxu0 0.0
    %156 = vmatpush2.msra.mxu0 0.0
    %157 = vmatprep.subr.mxu0 0.0
    %158 = vmatpush2.msra.mxu0 0.0
    %159 = vmatprep.subr.mxu0 0.0
    %160 = vmatpush2.msra.mxu0 0.0
    %161 = vmatprep.subr.mxu0 0.0
    %162 = vmatpush2.msra.mxu0 0.0
    %163 = vmatprep.subr.mxu0 0.0
    %164 = vmatpush2.msra.mxu0 0.0
    %165 = vmatprep.subr.mxu0 0.0
    %166 = vmatpush2.msra.mxu0 0.0
    %167 = vmatprep.subr.mxu0 0.0
    %168 = vmatpush2.msra.mxu0 0.0
    %169 = vmatprep.subr.mxu0 0.0
    %170 = vmatpush2.msra.mxu0 0.0
    %171 = vmatprep.mubr.f32.mxu0 0.0
    %172 = vmatmul.mubr.f32.gmra.mxu0 0.0
    %v173 = vpop.f32.mrf.mxu0
    %v174 = vadd.f32 %v103, %v173
    %v175 = vpop.f32.mrf.mxu0
    %v176 = vadd.f32 %v104, %v175
    %177 = vdwg.mxu0
    %178 = vmatprep.subr.mxu0 %v102
    %179 = vmatpush1.msra.mxu0 %v101
    %180 = vmatprep.subr.mxu0 %v98
    %181 = vmatpush1.msra.mxu0 %v97
    %182 = vmatprep.subr.mxu0 %v94
    %183 = vmatpush1.msra.mxu0 %v93
    %184 = vmatprep.subr.mxu0 %v90
    %185 = vmatpush1.msra.mxu0 %v89
    %186 = vmatprep.subr.mxu0 %v86
    %187 = vmatpush1.msra.mxu0 %v85
    %188 = vmatprep.subr.mxu0 %v82
    %189 = vmatpush1.msra.mxu0 %v81
    %190 = vmatprep.subr.mxu0 %v78
    %191 = vmatpush1.msra.mxu0 %v77
    %192 = vmatprep.subr.mxu0 %v74
    %193 = vmatpush1.msra.mxu0 %v73
    %194 = vmatprep.subr.mxu0 %v70
    %195 = vmatpush1.msra.mxu0 %v69
    %196 = vmatprep.subr.mxu0 %v66
    %197 = vmatpush1.msra.mxu0 %v65
    %198 = vmatprep.subr.mxu0 %v62
    %199 = vmatpush1.msra.mxu0 %v61
    %200 = vmatprep.subr.mxu0 %v58
    %201 = vmatpush1.msra.mxu0 %v57
    %202 = vmatprep.subr.mxu0 %v54
    %203 = vmatpush1.msra.mxu0 %v53
    %204 = vmatprep.subr.mxu0 %v50
    %205 = vmatpush1.msra.mxu0 %v49
    %206 = vmatprep.subr.mxu0 %v46
    %207 = vmatpush1.msra.mxu0 %v45
    %208 = vmatprep.subr.mxu0 %v42
    %209 = vmatpush1.msra.mxu0 %v41
    %210 = vmatprep.subr.mxu0 0.0
    %211 = vmatpush2.msra.mxu0 0.0
    %212 = vmatprep.subr.mxu0 0.0
    %213 = vmatpush2.msra.mxu0 0.0
    %214 = vmatprep.subr.mxu0 0.0
    %215 = vmatpush2.msra.mxu0 0.0
    %216 = vmatprep.subr.mxu0 0.0
    %217 = vmatpush2.msra.mxu0 0.0
    %218 = vmatprep.subr.mxu0 0.0
    %219 = vmatpush2.msra.mxu0 0.0
    %220 = vmatprep.subr.mxu0 0.0
    %221 = vmatpush2.msra.mxu0 0.0
    %222 = vmatprep.subr.mxu0 0.0
    %223 = vmatpush2.msra.mxu0 0.0
    %224 = vmatprep.subr.mxu0 0.0
    %225 = vmatpush2.msra.mxu0 0.0
    %226 = vmatprep.subr.mxu0 0.0
    %227 = vmatpush2.msra.mxu0 0.0
    %228 = vmatprep.subr.mxu0 0.0
    %229 = vmatpush2.msra.mxu0 0.0
    %230 = vmatprep.subr.mxu0 0.0
    %231 = vmatpush2.msra.mxu0 0.0
    %232 = vmatprep.subr.mxu0 0.0
    %233 = vmatpush2.msra.mxu0 0.0
    %234 = vmatprep.subr.mxu0 0.0
    %235 = vmatpush2.msra.mxu0 0.0
    %236 = vmatprep.subr.mxu0 0.0
    %237 = vmatpush2.msra.mxu0 0.0
    %238 = vmatprep.subr.mxu0 0.0
    %239 = vmatpush2.msra.mxu0 0.0
    %240 = vmatprep.subr.mxu0 0.0
    %241 = vmatpush2.msra.mxu0 0.0
    %242 = vmatprep.mubr.f32.mxu0 0.0
    %243 = vmatmul.mubr.f32.gmra.mxu0 0.0
    %v244 = vpop.f32.mrf.mxu0
    %v245 = vadd.f32 %v105, %v244
    %v246 = vpop.f32.mrf.mxu0
    %v247 = vadd.f32 %v106, %v246
    %248 = vdwg.mxu0
    %v249 = vxor.u32 %v174, 2147483648
    %v250 = vxor.u32 %v176, 2147483648
    %v251 = vxor.u32 %v245, 2147483648
    %v252 = vmul.f32 %v249, 1.442695
    %v253 = vpow.pop %v252
    %v254 = vmul.f32 %v250, 1.442695
    %v255 = vpow.pop %v254
    %v256 = vmul.f32 %v251, 1.442695
    %v257 = vpow.pop %v256
    %v258 = vadd.f32 %v253, 1.0
    %v259 = vadd.f32 %v255, 1.0
    %v260 = vadd.f32 %v257, 1.0
    %v261 = vrcp.pop %v258
    %v262 = vmul.f32 1.0, %v261
    %v263 = vrcp.pop %v259
    %v264 = vmul.f32 1.0, %v263
    %v265 = vrcp.pop %v260
    %v266 = vmul.f32 1.0, %v265
    %v267 = vtanh.pop %v247
    %v268 = vmul.f32 %v264, 0.0
    %v269 = vmul.f32 %v262, %v267
    %v270 = vadd.f32 %v268, %v269
    %v271 = vtanh.pop %v270
    %v272 = vmul.f32 %v266, %v271
    %s273 = scalar_lea.vmem %s0, 32
    %v274 = vld [vmem:[%s273] sm:$0xff]
    %v275 = vld [vmem:[%s273 + $0x8] sm:$0xff]
    %v276 = vld [vmem:[%s273 + $0x10] sm:$0xff]
    %v277 = vld [vmem:[%s273 + $0x18] sm:$0xff]
    %278 = vmatprep.subr.mxu0 %v100
    %279 = vmatpush1.msra.mxu0 %v99
    %280 = vmatprep.subr.mxu0 %v96
    %281 = vmatpush1.msra.mxu0 %v95
    %282 = vmatprep.subr.mxu0 %v92
    %283 = vmatpush1.msra.mxu0 %v91
    %284 = vmatprep.subr.mxu0 %v88
    %285 = vmatpush1.msra.mxu0 %v87
    %286 = vmatprep.subr.mxu0 %v84
    %287 = vmatpush1.msra.mxu0 %v83
    %288 = vmatprep.subr.mxu0 %v80
    %289 = vmatpush1.msra.mxu0 %v79
    %290 = vmatprep.subr.mxu0 %v76
    %291 = vmatpush1.msra.mxu0 %v75
    %292 = vmatprep.subr.mxu0 %v72
    %293 = vmatpush1.msra.mxu0 %v71
    %294 = vmatprep.subr.mxu0 %v68
    %295 = vmatpush1.msra.mxu0 %v67
    %296 = vmatprep.subr.mxu0 %v64
    %297 = vmatpush1.msra.mxu0 %v63
    %298 = vmatprep.subr.mxu0 %v60
    %299 = vmatpush1.msra.mxu0 %v59
    %300 = vmatprep.subr.mxu0 %v56
    %301 = vmatpush1.msra.mxu0 %v55
    %302 = vmatprep.subr.mxu0 %v52
    %303 = vmatpush1.msra.mxu0 %v51
    %304 = vmatprep.subr.mxu0 %v48
    %305 = vmatpush1.msra.mxu0 %v47
    %306 = vmatprep.subr.mxu0 %v44
    %307 = vmatpush1.msra.mxu0 %v43
    %308 = vmatprep.subr.mxu0 %v40
    %309 = vmatpush1.msra.mxu0 %v39
    %310 = vmatprep.subr.mxu0 0.0
    %311 = vmatpush2.msra.mxu0 0.0
    %312 = vmatprep.subr.mxu0 0.0
    %313 = vmatpush2.msra.mxu0 0.0
    %314 = vmatprep.subr.mxu0 0.0
    %315 = vmatpush2.msra.mxu0 0.0
    %316 = vmatprep.subr.mxu0 0.0
    %317 = vmatpush2.msra.mxu0 0.0
    %318 = vmatprep.subr.mxu0 0.0
    %319 = vmatpush2.msra.mxu0 0.0
    %320 = vmatprep.subr.mxu0 0.0
    %321 = vmatpush2.msra.mxu0 0.0
    %322 = vmatprep.subr.mxu0 0.0
    %323 = vmatpush2.msra.mxu0 0.0
    %324 = vmatprep.subr.mxu0 0.0
    %325 = vmatpush2.msra.mxu0 0.0
    %326 = vmatprep.subr.mxu0 0.0
    %327 = vmatpush2.msra.mxu0 0.0
    %328 = vmatprep.subr.mxu0 0.0
    %329 = vmatpush2.msra.mxu0 0.0
    %330 = vmatprep.subr.mxu0 0.0
    %331 = vmatpush2.msra.mxu0 0.0
    %332 = vmatprep.subr.mxu0 0.0
    %333 = vmatpush2.msra.mxu0 0.0
    %334 = vmatprep.subr.mxu0 0.0
    %335 = vmatpush2.msra.mxu0 0.0
    %336 = vmatprep.subr.mxu0 0.0
    %337 = vmatpush2.msra.mxu0 0.0
    %338 = vmatprep.subr.mxu0 0.0
    %339 = vmatpush2.msra.mxu0 0.0
    %340 = vmatprep.subr.mxu0 0.0
    %341 = vmatpush2.msra.mxu0 0.0
    %342 = vmatprep.mubr.f32.mxu0 0.0
    %343 = vmatmul.mubr.f32.gmra.mxu0 %v272
    %v344 = vpop.f32.mrf.mxu0
    %v345 = vadd.f32 %v274, %v344
    %v346 = vpop.f32.mrf.mxu0
    %v347 = vadd.f32 %v275, %v346
    %348 = vdwg.mxu0
    %349 = vmatprep.subr.mxu0 %v102
    %350 = vmatpush1.msra.mxu0 %v101
    %351 = vmatprep.subr.mxu0 %v98
    %352 = vmatpush1.msra.mxu0 %v97
    %353 = vmatprep.subr.mxu0 %v94
    %354 = vmatpush1.msra.mxu0 %v93
    %355 = vmatprep.subr.mxu0 %v90
    %356 = vmatpush1.msra.mxu0 %v89
    %357 = vmatprep.subr.mxu0 %v86
    %358 = vmatpush1.msra.mxu0 %v85
    %359 = vmatprep.subr.mxu0 %v82
    %360 = vmatpush1.msra.mxu0 %v81
    %361 = vmatprep.subr.mxu0 %v78
    %362 = vmatpush1.msra.mxu0 %v77
    %363 = vmatprep.subr.mxu0 %v74
    %364 = vmatpush1.msra.mxu0 %v73
    %365 = vmatprep.subr.mxu0 %v70
    %366 = vmatpush1.msra.mxu0 %v69
    %367 = vmatprep.subr.mxu0 %v66
    %368 = vmatpush1.msra.mxu0 %v65
    %369 = vmatprep.subr.mxu0 %v62
    %370 = vmatpush1.msra.mxu0 %v61
    %371 = vmatprep.subr.mxu0 %v58
    %372 = vmatpush1.msra.mxu0 %v57
    %373 = vmatprep.subr.mxu0 %v54
    %374 = vmatpush1.msra.mxu0 %v53
    %375 = vmatprep.subr.mxu0 %v50
    %376 = vmatpush1.msra.mxu0 %v49
    %377 = vmatprep.subr.mxu0 %v46
    %378 = vmatpush1.msra.mxu0 %v45
    %379 = vmatprep.subr.mxu0 %v42
    %380 = vmatpush1.msra.mxu0 %v41
    %381 = vmatprep.subr.mxu0 0.0
    %382 = vmatpush2.msra.mxu0 0.0
    %383 = vmatprep.subr.mxu0 0.0
    %384 = vmatpush2.msra.mxu0 0.0
    %385 = vmatprep.subr.mxu0 0.0
    %386 = vmatpush2.msra.mxu0 0.0
    %387 = vmatprep.subr.mxu0 0.0
    %388 = vmatpush2.msra.mxu0 0.0
    %389 = vmatprep.subr.mxu0 0.0
    %390 = vmatpush2.msra.mxu0 0.0
    %391 = vmatprep.subr.mxu0 0.0
    %392 = vmatpush2.msra.mxu0 0.0
    %393 = vmatprep.subr.mxu0 0.0
    %394 = vmatpush2.msra.mxu0 0.0
    %395 = vmatprep.subr.mxu0 0.0
    %396 = vmatpush2.msra.mxu0 0.0
    %397 = vmatprep.subr.mxu0 0.0
    %398 = vmatpush2.msra.mxu0 0.0
    %399 = vmatprep.subr.mxu0 0.0
    %400 = vmatpush2.msra.mxu0 0.0
    %401 = vmatprep.subr.mxu0 0.0
    %402 = vmatpush2.msra.mxu0 0.0
    %403 = vmatprep.subr.mxu0 0.0
    %404 = vmatpush2.msra.mxu0 0.0
    %405 = vmatprep.subr.mxu0 0.0
    %406 = vmatpush2.msra.mxu0 0.0
    %407 = vmatprep.subr.mxu0 0.0
    %408 = vmatpush2.msra.mxu0 0.0
    %409 = vmatprep.subr.mxu0 0.0
    %410 = vmatpush2.msra.mxu0 0.0
    %411 = vmatprep.subr.mxu0 0.0
    %412 = vmatpush2.msra.mxu0 0.0
    %413 = vmatprep.mubr.f32.mxu0 0.0
    %414 = vmatmul.mubr.f32.gmra.mxu0 %v272
    %v415 = vpop.f32.mrf.mxu0
    %v416 = vadd.f32 %v276, %v415
    %v417 = vpop.f32.mrf.mxu0
    %v418 = vadd.f32 %v277, %v417
    %419 = vdwg.mxu0
    %v420 = vxor.u32 %v345, 2147483648
    %v421 = vxor.u32 %v347, 2147483648
    %v422 = vxor.u32 %v416, 2147483648
    %v423 = vmul.f32 %v420, 1.442695
    %v424 = vpow.pop %v423
    %v425 = vmul.f32 %v421, 1.442695
    %v426 = vpow.pop %v425
    %v427 = vmul.f32 %v422, 1.442695
    %v428 = vpow.pop %v427
    %v429 = vadd.f32 %v424, 1.0
    %v430 = vadd.f32 %v426, 1.0
    %v431 = vadd.f32 %v428, 1.0
    %v432 = vrcp.pop %v429
    %v433 = vmul.f32 1.0, %v432
    %v434 = vrcp.pop %v430
    %v435 = vmul.f32 1.0, %v434
    %v436 = vrcp.pop %v431
    %v437 = vmul.f32 1.0, %v436
    %v438 = vtanh.pop %v418
    %v439 = vmul.f32 %v435, %v270
    %v440 = vmul.f32 %v433, %v438
    %v441 = vadd.f32 %v439, %v440
    %v442 = vtanh.pop %v441
    %v443 = vmul.f32 %v437, %v442
    %s444 = scalar_lea.vmem %s0, 64
    %v445 = vld [vmem:[%s444] sm:$0xff]
    %v446 = vld [vmem:[%s444 + $0x8] sm:$0xff]
    %v447 = vld [vmem:[%s444 + $0x10] sm:$0xff]
    %v448 = vld [vmem:[%s444 + $0x18] sm:$0xff]
    %449 = vmatprep.subr.mxu0 %v100
    %450 = vmatpush1.msra.mxu0 %v99
    %451 = vmatprep.subr.mxu0 %v96
    %452 = vmatpush1.msra.mxu0 %v95
    %453 = vmatprep.subr.mxu0 %v92
    %454 = vmatpush1.msra.mxu0 %v91
    %455 = vmatprep.subr.mxu0 %v88
    %456 = vmatpush1.msra.mxu0 %v87
    %457 = vmatprep.subr.mxu0 %v84
    %458 = vmatpush1.msra.mxu0 %v83
    %459 = vmatprep.subr.mxu0 %v80
    %460 = vmatpush1.msra.mxu0 %v79
    %461 = vmatprep.subr.mxu0 %v76
    %462 = vmatpush1.msra.mxu0 %v75
    %463 = vmatprep.subr.mxu0 %v72
    %464 = vmatpush1.msra.mxu0 %v71
    %465 = vmatprep.subr.mxu0 %v68
    %466 = vmatpush1.msra.mxu0 %v67
    %467 = vmatprep.subr.mxu0 %v64
    %468 = vmatpush1.msra.mxu0 %v63
    %469 = vmatprep.subr.mxu0 %v60
    %470 = vmatpush1.msra.mxu0 %v59
    %471 = vmatprep.subr.mxu0 %v56
    %472 = vmatpush1.msra.mxu0 %v55
    %473 = vmatprep.subr.mxu0 %v52
    %474 = vmatpush1.msra.mxu0 %v51
    %475 = vmatprep.subr.mxu0 %v48
    %476 = vmatpush1.msra.mxu0 %v47
    %477 = vmatprep.subr.mxu0 %v44
    %478 = vmatpush1.msra.mxu0 %v43
    %479 = vmatprep.subr.mxu0 %v40
    %480 = vmatpush1.msra.mxu0 %v39
    %481 = vmatprep.subr.mxu0 0.0
    %482 = vmatpush2.msra.mxu0 0.0
    %483 = vmatprep.subr.mxu0 0.0
    %484 = vmatpush2.msra.mxu0 0.0
    %485 = vmatprep.subr.mxu0 0.0
    %486 = vmatpush2.msra.mxu0 0.0
    %487 = vmatprep.subr.mxu0 0.0
    %488 = vmatpush2.msra.mxu0 0.0
    %489 = vmatprep.subr.mxu0 0.0
    %490 = vmatpush2.msra.mxu0 0.0
    %491 = vmatprep.subr.mxu0 0.0
    %492 = vmatpush2.msra.mxu0 0.0
    %493 = vmatprep.subr.mxu0 0.0
    %494 = vmatpush2.msra.mxu0 0.0
    %495 = vmatprep.subr.mxu0 0.0
    %496 = vmatpush2.msra.mxu0 0.0
    %497 = vmatprep.subr.mxu0 0.0
    %498 = vmatpush2.msra.mxu0 0.0
    %499 = vmatprep.subr.mxu0 0.0
    %500 = vmatpush2.msra.mxu0 0.0
    %501 = vmatprep.subr.mxu0 0.0
    %502 = vmatpush2.msra.mxu0 0.0
    %503 = vmatprep.subr.mxu0 0.0
    %504 = vmatpush2.msra.mxu0 0.0
    %505 = vmatprep.subr.mxu0 0.0
    %506 = vmatpush2.msra.mxu0 0.0
    %507 = vmatprep.subr.mxu0 0.0
    %508 = vmatpush2.msra.mxu0 0.0
    %509 = vmatprep.subr.mxu0 0.0
    %510 = vmatpush2.msra.mxu0 0.0
    %511 = vmatprep.subr.mxu0 0.0
    %512 = vmatpush2.msra.mxu0 0.0
    %513 = vmatprep.mubr.f32.mxu0 0.0
    %514 = vmatmul.mubr.f32.gmra.mxu0 %v443
    %v515 = vpop.f32.mrf.mxu0
    %v516 = vadd.f32 %v445, %v515
    %v517 = vpop.f32.mrf.mxu0
    %v518 = vadd.f32 %v446, %v517
    %519 = vdwg.mxu0
    %520 = vmatprep.subr.mxu0 %v102
    %521 = vmatpush1.msra.mxu0 %v101
    %522 = vmatprep.subr.mxu0 %v98
    %523 = vmatpush1.msra.mxu0 %v97
    %524 = vmatprep.subr.mxu0 %v94
    %525 = vmatpush1.msra.mxu0 %v93
    %526 = vmatprep.subr.mxu0 %v90
    %527 = vmatpush1.msra.mxu0 %v89
    %528 = vmatprep.subr.mxu0 %v86
    %529 = vmatpush1.msra.mxu0 %v85
    %530 = vmatprep.subr.mxu0 %v82
    %531 = vmatpush1.msra.mxu0 %v81
    %532 = vmatprep.subr.mxu0 %v78
    %533 = vmatpush1.msra.mxu0 %v77
    %534 = vmatprep.subr.mxu0 %v74
    %535 = vmatpush1.msra.mxu0 %v73
    %536 = vmatprep.subr.mxu0 %v70
    %537 = vmatpush1.msra.mxu0 %v69
    %538 = vmatprep.subr.mxu0 %v66
    %539 = vmatpush1.msra.mxu0 %v65
    %540 = vmatprep.subr.mxu0 %v62
    %541 = vmatpush1.msra.mxu0 %v61
    %542 = vmatprep.subr.mxu0 %v58
    %543 = vmatpush1.msra.mxu0 %v57
    %544 = vmatprep.subr.mxu0 %v54
    %545 = vmatpush1.msra.mxu0 %v53
    %546 = vmatprep.subr.mxu0 %v50
    %547 = vmatpush1.msra.mxu0 %v49
    %548 = vmatprep.subr.mxu0 %v46
    %549 = vmatpush1.msra.mxu0 %v45
    %550 = vmatprep.subr.mxu0 %v42
    %551 = vmatpush1.msra.mxu0 %v41
    %552 = vmatprep.subr.mxu0 0.0
    %553 = vmatpush2.msra.mxu0 0.0
    %554 = vmatprep.subr.mxu0 0.0
    %555 = vmatpush2.msra.mxu0 0.0
    %556 = vmatprep.subr.mxu0 0.0
    %557 = vmatpush2.msra.mxu0 0.0
    %558 = vmatprep.subr.mxu0 0.0
    %559 = vmatpush2.msra.mxu0 0.0
    %560 = vmatprep.subr.mxu0 0.0
    %561 = vmatpush2.msra.mxu0 0.0
    %562 = vmatprep.subr.mxu0 0.0
    %563 = vmatpush2.msra.mxu0 0.0
    %564 = vmatprep.subr.mxu0 0.0
    %565 = vmatpush2.msra.mxu0 0.0
    %566 = vmatprep.subr.mxu0 0.0
    %567 = vmatpush2.msra.mxu0 0.0
    %568 = vmatprep.subr.mxu0 0.0
    %569 = vmatpush2.msra.mxu0 0.0
    %570 = vmatprep.subr.mxu0 0.0
    %571 = vmatpush2.msra.mxu0 0.0
    %572 = vmatprep.subr.mxu0 0.0
    %573 = vmatpush2.msra.mxu0 0.0
    %574 = vmatprep.subr.mxu0 0.0
    %575 = vmatpush2.msra.mxu0 0.0
    %576 = vmatprep.subr.mxu0 0.0
    %577 = vmatpush2.msra.mxu0 0.0
    %578 = vmatprep.subr.mxu0 0.0
    %579 = vmatpush2.msra.mxu0 0.0
    %580 = vmatprep.subr.mxu0 0.0
    %581 = vmatpush2.msra.mxu0 0.0
    %582 = vmatprep.subr.mxu0 0.0
    %583 = vmatpush2.msra.mxu0 0.0
    %584 = vmatprep.mubr.f32.mxu0 0.0
    %585 = vmatmul.mubr.f32.gmra.mxu0 %v443
    %v586 = vpop.f32.mrf.mxu0
    %v587 = vadd.f32 %v447, %v586
    %v588 = vpop.f32.mrf.mxu0
    %v589 = vadd.f32 %v448, %v588
    %590 = vdwg.mxu0
    %v591 = vxor.u32 %v516, 2147483648
    %v592 = vxor.u32 %v518, 2147483648
    %v593 = vxor.u32 %v587, 2147483648
    %v594 = vmul.f32 %v591, 1.442695
    %v595 = vpow.pop %v594
    %v596 = vmul.f32 %v592, 1.442695
    %v597 = vpow.pop %v596
    %v598 = vmul.f32 %v593, 1.442695
    %v599 = vpow.pop %v598
    %v600 = vadd.f32 %v595, 1.0
    %v601 = vadd.f32 %v597, 1.0
    %v602 = vadd.f32 %v599, 1.0
    %v603 = vrcp.pop %v600
    %v604 = vmul.f32 1.0, %v603
    %v605 = vrcp.pop %v601
    %v606 = vmul.f32 1.0, %v605
    %v607 = vrcp.pop %v602
    %v608 = vmul.f32 1.0, %v607
    %v609 = vtanh.pop %v589
    %v610 = vmul.f32 %v606, %v441
    %v611 = vmul.f32 %v604, %v609
    %v612 = vadd.f32 %v610, %v611
    %v613 = vtanh.pop %v612
    %v614 = vmul.f32 %v608, %v613
    %s615 = scalar_lea.vmem %s0, 96
    %v616 = vld [vmem:[%s615] sm:$0xff]
    %v617 = vld [vmem:[%s615 + $0x8] sm:$0xff]
    %v618 = vld [vmem:[%s615 + $0x10] sm:$0xff]
    %v619 = vld [vmem:[%s615 + $0x18] sm:$0xff]
    %620 = vmatprep.subr.mxu0 %v100
    %621 = vmatpush1.msra.mxu0 %v99
    %622 = vmatprep.subr.mxu0 %v96
    %623 = vmatpush1.msra.mxu0 %v95
    %624 = vmatprep.subr.mxu0 %v92
    %625 = vmatpush1.msra.mxu0 %v91
    %626 = vmatprep.subr.mxu0 %v88
    %627 = vmatpush1.msra.mxu0 %v87
    %628 = vmatprep.subr.mxu0 %v84
    %629 = vmatpush1.msra.mxu0 %v83
    %630 = vmatprep.subr.mxu0 %v80
    %631 = vmatpush1.msra.mxu0 %v79
    %632 = vmatprep.subr.mxu0 %v76
    %633 = vmatpush1.msra.mxu0 %v75
    %634 = vmatprep.subr.mxu0 %v72
    %635 = vmatpush1.msra.mxu0 %v71
    %636 = vmatprep.subr.mxu0 %v68
    %637 = vmatpush1.msra.mxu0 %v67
    %638 = vmatprep.subr.mxu0 %v64
    %639 = vmatpush1.msra.mxu0 %v63
    %640 = vmatprep.subr.mxu0 %v60
    %641 = vmatpush1.msra.mxu0 %v59
    %642 = vmatprep.subr.mxu0 %v56
    %643 = vmatpush1.msra.mxu0 %v55
    %644 = vmatprep.subr.mxu0 %v52
    %645 = vmatpush1.msra.mxu0 %v51
    %646 = vmatprep.subr.mxu0 %v48
    %647 = vmatpush1.msra.mxu0 %v47
    %648 = vmatprep.subr.mxu0 %v44
    %649 = vmatpush1.msra.mxu0 %v43
    %650 = vmatprep.subr.mxu0 %v40
    %651 = vmatpush1.msra.mxu0 %v39
    %652 = vmatprep.subr.mxu0 0.0
    %653 = vmatpush2.msra.mxu0 0.0
    %654 = vmatprep.subr.mxu0 0.0
    %655 = vmatpush2.msra.mxu0 0.0
    %656 = vmatprep.subr.mxu0 0.0
    %657 = vmatpush2.msra.mxu0 0.0
    %658 = vmatprep.subr.mxu0 0.0
    %659 = vmatpush2.msra.mxu0 0.0
    %660 = vmatprep.subr.mxu0 0.0
    %661 = vmatpush2.msra.mxu0 0.0
    %662 = vmatprep.subr.mxu0 0.0
    %663 = vmatpush2.msra.mxu0 0.0
    %664 = vmatprep.subr.mxu0 0.0
    %665 = vmatpush2.msra.mxu0 0.0
    %666 = vmatprep.subr.mxu0 0.0
    %667 = vmatpush2.msra.mxu0 0.0
    %668 = vmatprep.subr.mxu0 0.0
    %669 = vmatpush2.msra.mxu0 0.0
    %670 = vmatprep.subr.mxu0 0.0
    %671 = vmatpush2.msra.mxu0 0.0
    %672 = vmatprep.subr.mxu0 0.0
    %673 = vmatpush2.msra.mxu0 0.0
    %674 = vmatprep.subr.mxu0 0.0
    %675 = vmatpush2.msra.mxu0 0.0
    %676 = vmatprep.subr.mxu0 0.0
    %677 = vmatpush2.msra.mxu0 0.0
    %678 = vmatprep.subr.mxu0 0.0
    %679 = vmatpush2.msra.mxu0 0.0
    %680 = vmatprep.subr.mxu0 0.0
    %681 = vmatpush2.msra.mxu0 0.0
    %682 = vmatprep.subr.mxu0 0.0
    %683 = vmatpush2.msra.mxu0 0.0
    %684 = vmatprep.mubr.f32.mxu0 0.0
    %685 = vmatmul.mubr.f32.gmra.mxu0 %v614
    %v686 = vpop.f32.mrf.mxu0
    %v687 = vadd.f32 %v616, %v686
    %v688 = vpop.f32.mrf.mxu0
    %v689 = vadd.f32 %v617, %v688
    %690 = vdwg.mxu0
    %691 = vmatprep.subr.mxu0 %v102
    %692 = vmatpush1.msra.mxu0 %v101
    %693 = vmatprep.subr.mxu0 %v98
    %694 = vmatpush1.msra.mxu0 %v97
    %695 = vmatprep.subr.mxu0 %v94
    %696 = vmatpush1.msra.mxu0 %v93
    %697 = vmatprep.subr.mxu0 %v90
    %698 = vmatpush1.msra.mxu0 %v89
    %699 = vmatprep.subr.mxu0 %v86
    %700 = vmatpush1.msra.mxu0 %v85
    %701 = vmatprep.subr.mxu0 %v82
    %702 = vmatpush1.msra.mxu0 %v81
    %703 = vmatprep.subr.mxu0 %v78
    %704 = vmatpush1.msra.mxu0 %v77
    %705 = vmatprep.subr.mxu0 %v74
    %706 = vmatpush1.msra.mxu0 %v73
    %707 = vmatprep.subr.mxu0 %v70
    %708 = vmatpush1.msra.mxu0 %v69
    %709 = vmatprep.subr.mxu0 %v66
    %710 = vmatpush1.msra.mxu0 %v65
    %711 = vmatprep.subr.mxu0 %v62
    %712 = vmatpush1.msra.mxu0 %v61
    %713 = vmatprep.subr.mxu0 %v58
    %714 = vmatpush1.msra.mxu0 %v57
    %715 = vmatprep.subr.mxu0 %v54
    %716 = vmatpush1.msra.mxu0 %v53
    %717 = vmatprep.subr.mxu0 %v50
    %718 = vmatpush1.msra.mxu0 %v49
    %719 = vmatprep.subr.mxu0 %v46
    %720 = vmatpush1.msra.mxu0 %v45
    %721 = vmatprep.subr.mxu0 %v42
    %722 = vmatpush1.msra.mxu0 %v41
    %723 = vmatprep.subr.mxu0 0.0
    %724 = vmatpush2.msra.mxu0 0.0
    %725 = vmatprep.subr.mxu0 0.0
    %726 = vmatpush2.msra.mxu0 0.0
    %727 = vmatprep.subr.mxu0 0.0
    %728 = vmatpush2.msra.mxu0 0.0
    %729 = vmatprep.subr.mxu0 0.0
    %730 = vmatpush2.msra.mxu0 0.0
    %731 = vmatprep.subr.mxu0 0.0
    %732 = vmatpush2.msra.mxu0 0.0
    %733 = vmatprep.subr.mxu0 0.0
    %734 = vmatpush2.msra.mxu0 0.0
    %735 = vmatprep.subr.mxu0 0.0
    %736 = vmatpush2.msra.mxu0 0.0
    %737 = vmatprep.subr.mxu0 0.0
    %738 = vmatpush2.msra.mxu0 0.0
    %739 = vmatprep.subr.mxu0 0.0
    %740 = vmatpush2.msra.mxu0 0.0
    %741 = vmatprep.subr.mxu0 0.0
    %742 = vmatpush2.msra.mxu0 0.0
    %743 = vmatprep.subr.mxu0 0.0
    %744 = vmatpush2.msra.mxu0 0.0
    %745 = vmatprep.subr.mxu0 0.0
    %746 = vmatpush2.msra.mxu0 0.0
    %747 = vmatprep.subr.mxu0 0.0
    %748 = vmatpush2.msra.mxu0 0.0
    %749 = vmatprep.subr.mxu0 0.0
    %750 = vmatpush2.msra.mxu0 0.0
    %751 = vmatprep.subr.mxu0 0.0
    %752 = vmatpush2.msra.mxu0 0.0
    %753 = vmatprep.subr.mxu0 0.0
    %754 = vmatpush2.msra.mxu0 0.0
    %755 = vmatprep.mubr.f32.mxu0 0.0
    %756 = vmatmul.mubr.f32.gmra.mxu0 %v614
    %v757 = vpop.f32.mrf.mxu0
    %v758 = vadd.f32 %v618, %v757
    %v759 = vpop.f32.mrf.mxu0
    %v760 = vadd.f32 %v619, %v759
    %761 = vdwg.mxu0
    %v762 = vxor.u32 %v687, 2147483648
    %v763 = vxor.u32 %v689, 2147483648
    %v764 = vxor.u32 %v758, 2147483648
    %v765 = vmul.f32 %v762, 1.442695
    %v766 = vpow.pop %v765
    %v767 = vmul.f32 %v763, 1.442695
    %v768 = vpow.pop %v767
    %v769 = vmul.f32 %v764, 1.442695
    %v770 = vpow.pop %v769
    %v771 = vadd.f32 %v766, 1.0
    %v772 = vadd.f32 %v768, 1.0
    %v773 = vadd.f32 %v770, 1.0
    %v774 = vrcp.pop %v771
    %v775 = vmul.f32 1.0, %v774
    %v776 = vrcp.pop %v772
    %v777 = vmul.f32 1.0, %v776
    %v778 = vrcp.pop %v773
    %v779 = vmul.f32 1.0, %v778
    %v780 = vtanh.pop %v760
    %v781 = vmul.f32 %v777, %v612
    %v782 = vmul.f32 %v775, %v780
    %v783 = vadd.f32 %v781, %v782
    %v784 = vtanh.pop %v783
    %v785 = vmul.f32 %v779, %v784
    %s786 = scalar_lea.vmem %s0, 128
    %v787 = vld [vmem:[%s786] sm:$0xff]
    %v788 = vld [vmem:[%s786 + $0x8] sm:$0xff]
    %v789 = vld [vmem:[%s786 + $0x10] sm:$0xff]
    %v790 = vld [vmem:[%s786 + $0x18] sm:$0xff]
    %791 = vmatprep.subr.mxu0 %v100
    %792 = vmatpush1.msra.mxu0 %v99
    %793 = vmatprep.subr.mxu0 %v96
    %794 = vmatpush1.msra.mxu0 %v95
    %795 = vmatprep.subr.mxu0 %v92
    %796 = vmatpush1.msra.mxu0 %v91
    %797 = vmatprep.subr.mxu0 %v88
    %798 = vmatpush1.msra.mxu0 %v87
    %799 = vmatprep.subr.mxu0 %v84
    %800 = vmatpush1.msra.mxu0 %v83
    %801 = vmatprep.subr.mxu0 %v80
    %802 = vmatpush1.msra.mxu0 %v79
    %803 = vmatprep.subr.mxu0 %v76
    %804 = vmatpush1.msra.mxu0 %v75
    %805 = vmatprep.subr.mxu0 %v72
    %806 = vmatpush1.msra.mxu0 %v71
    %807 = vmatprep.subr.mxu0 %v68
    %808 = vmatpush1.msra.mxu0 %v67
    %809 = vmatprep.subr.mxu0 %v64
    %810 = vmatpush1.msra.mxu0 %v63
    %811 = vmatprep.subr.mxu0 %v60
    %812 = vmatpush1.msra.mxu0 %v59
    %813 = vmatprep.subr.mxu0 %v56
    %814 = vmatpush1.msra.mxu0 %v55
    %815 = vmatprep.subr.mxu0 %v52
    %816 = vmatpush1.msra.mxu0 %v51
    %817 = vmatprep.subr.mxu0 %v48
    %818 = vmatpush1.msra.mxu0 %v47
    %819 = vmatprep.subr.mxu0 %v44
    %820 = vmatpush1.msra.mxu0 %v43
    %821 = vmatprep.subr.mxu0 %v40
    %822 = vmatpush1.msra.mxu0 %v39
    %823 = vmatprep.subr.mxu0 0.0
    %824 = vmatpush2.msra.mxu0 0.0
    %825 = vmatprep.subr.mxu0 0.0
    %826 = vmatpush2.msra.mxu0 0.0
    %827 = vmatprep.subr.mxu0 0.0
    %828 = vmatpush2.msra.mxu0 0.0
    %829 = vmatprep.subr.mxu0 0.0
    %830 = vmatpush2.msra.mxu0 0.0
    %831 = vmatprep.subr.mxu0 0.0
    %832 = vmatpush2.msra.mxu0 0.0
    %833 = vmatprep.subr.mxu0 0.0
    %834 = vmatpush2.msra.mxu0 0.0
    %835 = vmatprep.subr.mxu0 0.0
    %836 = vmatpush2.msra.mxu0 0.0
    %837 = vmatprep.subr.mxu0 0.0
    %838 = vmatpush2.msra.mxu0 0.0
    %839 = vmatprep.subr.mxu0 0.0
    %840 = vmatpush2.msra.mxu0 0.0
    %841 = vmatprep.subr.mxu0 0.0
    %842 = vmatpush2.msra.mxu0 0.0
    %843 = vmatprep.subr.mxu0 0.0
    %844 = vmatpush2.msra.mxu0 0.0
    %845 = vmatprep.subr.mxu0 0.0
    %846 = vmatpush2.msra.mxu0 0.0
    %847 = vmatprep.subr.mxu0 0.0
    %848 = vmatpush2.msra.mxu0 0.0
    %849 = vmatprep.subr.mxu0 0.0
    %850 = vmatpush2.msra.mxu0 0.0
    %851 = vmatprep.subr.mxu0 0.0
    %852 = vmatpush2.msra.mxu0 0.0
    %853 = vmatprep.subr.mxu0 0.0
    %854 = vmatpush2.msra.mxu0 0.0
    %855 = vmatprep.mubr.f32.mxu0 0.0
    %856 = vmatmul.mubr.f32.gmra.mxu0 %v785
    %v857 = vpop.f32.mrf.mxu0
    %v858 = vadd.f32 %v787, %v857
    %v859 = vpop.f32.mrf.mxu0
    %v860 = vadd.f32 %v788, %v859
    %861 = vdwg.mxu0
    %862 = vmatprep.subr.mxu0 %v102
    %863 = vmatpush1.msra.mxu0 %v101
    %864 = vmatprep.subr.mxu0 %v98
    %865 = vmatpush1.msra.mxu0 %v97
    %866 = vmatprep.subr.mxu0 %v94
    %867 = vmatpush1.msra.mxu0 %v93
    %868 = vmatprep.subr.mxu0 %v90
    %869 = vmatpush1.msra.mxu0 %v89
    %870 = vmatprep.subr.mxu0 %v86
    %871 = vmatpush1.msra.mxu0 %v85
    %872 = vmatprep.subr.mxu0 %v82
    %873 = vmatpush1.msra.mxu0 %v81
    %874 = vmatprep.subr.mxu0 %v78
    %875 = vmatpush1.msra.mxu0 %v77
    %876 = vmatprep.subr.mxu0 %v74
    %877 = vmatpush1.msra.mxu0 %v73
    %878 = vmatprep.subr.mxu0 %v70
    %879 = vmatpush1.msra.mxu0 %v69
    %880 = vmatprep.subr.mxu0 %v66
    %881 = vmatpush1.msra.mxu0 %v65
    %882 = vmatprep.subr.mxu0 %v62
    %883 = vmatpush1.msra.mxu0 %v61
    %884 = vmatprep.subr.mxu0 %v58
    %885 = vmatpush1.msra.mxu0 %v57
    %886 = vmatprep.subr.mxu0 %v54
    %887 = vmatpush1.msra.mxu0 %v53
    %888 = vmatprep.subr.mxu0 %v50
    %889 = vmatpush1.msra.mxu0 %v49
    %890 = vmatprep.subr.mxu0 %v46
    %891 = vmatpush1.msra.mxu0 %v45
    %892 = vmatprep.subr.mxu0 %v42
    %893 = vmatpush1.msra.mxu0 %v41
    %894 = vmatprep.subr.mxu0 0.0
    %895 = vmatpush2.msra.mxu0 0.0
    %896 = vmatprep.subr.mxu0 0.0
    %897 = vmatpush2.msra.mxu0 0.0
    %898 = vmatprep.subr.mxu0 0.0
    %899 = vmatpush2.msra.mxu0 0.0
    %900 = vmatprep.subr.mxu0 0.0
    %901 = vmatpush2.msra.mxu0 0.0
    %902 = vmatprep.subr.mxu0 0.0
    %903 = vmatpush2.msra.mxu0 0.0
    %904 = vmatprep.subr.mxu0 0.0
    %905 = vmatpush2.msra.mxu0 0.0
    %906 = vmatprep.subr.mxu0 0.0
    %907 = vmatpush2.msra.mxu0 0.0
    %908 = vmatprep.subr.mxu0 0.0
    %909 = vmatpush2.msra.mxu0 0.0
    %910 = vmatprep.subr.mxu0 0.0
    %911 = vmatpush2.msra.mxu0 0.0
    %912 = vmatprep.subr.mxu0 0.0
    %913 = vmatpush2.msra.mxu0 0.0
    %914 = vmatprep.subr.mxu0 0.0
    %915 = vmatpush2.msra.mxu0 0.0
    %916 = vmatprep.subr.mxu0 0.0
    %917 = vmatpush2.msra.mxu0 0.0
    %918 = vmatprep.subr.mxu0 0.0
    %919 = vmatpush2.msra.mxu0 0.0
    %920 = vmatprep.subr.mxu0 0.0
    %921 = vmatpush2.msra.mxu0 0.0
    %922 = vmatprep.subr.mxu0 0.0
    %923 = vmatpush2.msra.mxu0 0.0
    %924 = vmatprep.subr.mxu0 0.0
    %925 = vmatpush2.msra.mxu0 0.0
    %926 = vmatprep.mubr.f32.mxu0 0.0
    %927 = vmatmul.mubr.f32.gmra.mxu0 %v785
    %v928 = vpop.f32.mrf.mxu0
    %v929 = vadd.f32 %v789, %v928
    %v930 = vpop.f32.mrf.mxu0
    %v931 = vadd.f32 %v790, %v930
    %932 = vdwg.mxu0
    %v933 = vxor.u32 %v858, 2147483648
    %v934 = vxor.u32 %v860, 2147483648
    %v935 = vxor.u32 %v929, 2147483648
    %v936 = vmul.f32 %v933, 1.442695
    %v937 = vpow.pop %v936
    %v938 = vmul.f32 %v934, 1.442695
    %v939 = vpow.pop %v938
    %v940 = vmul.f32 %v935, 1.442695
    %v941 = vpow.pop %v940
    %v942 = vadd.f32 %v937, 1.0
    %v943 = vadd.f32 %v939, 1.0
    %v944 = vadd.f32 %v941, 1.0
    %v945 = vrcp.pop %v942
    %v946 = vmul.f32 1.0, %v945
    %v947 = vrcp.pop %v943
    %v948 = vmul.f32 1.0, %v947
    %v949 = vrcp.pop %v944
    %v950 = vmul.f32 1.0, %v949
    %v951 = vtanh.pop %v931
    %v952 = vmul.f32 %v948, %v783
    %v953 = vmul.f32 %v946, %v951
    %v954 = vadd.f32 %v952, %v953
    %v955 = vtanh.pop %v954
    %v956 = vmul.f32 %v950, %v955
    %s957 = scalar_lea.vmem %s0, 160
    %v958 = vld [vmem:[%s957] sm:$0xff]
    %v959 = vld [vmem:[%s957 + $0x8] sm:$0xff]
    %v960 = vld [vmem:[%s957 + $0x10] sm:$0xff]
    %v961 = vld [vmem:[%s957 + $0x18] sm:$0xff]
    %962 = vmatprep.subr.mxu0 %v100
    %963 = vmatpush1.msra.mxu0 %v99
    %964 = vmatprep.subr.mxu0 %v96
    %965 = vmatpush1.msra.mxu0 %v95
    %966 = vmatprep.subr.mxu0 %v92
    %967 = vmatpush1.msra.mxu0 %v91
    %968 = vmatprep.subr.mxu0 %v88
    %969 = vmatpush1.msra.mxu0 %v87
    %970 = vmatprep.subr.mxu0 %v84
    %971 = vmatpush1.msra.mxu0 %v83
    %972 = vmatprep.subr.mxu0 %v80
    %973 = vmatpush1.msra.mxu0 %v79
    %974 = vmatprep.subr.mxu0 %v76
    %975 = vmatpush1.msra.mxu0 %v75
    %976 = vmatprep.subr.mxu0 %v72
    %977 = vmatpush1.msra.mxu0 %v71
    %978 = vmatprep.subr.mxu0 %v68
    %979 = vmatpush1.msra.mxu0 %v67
    %980 = vmatprep.subr.mxu0 %v64
    %981 = vmatpush1.msra.mxu0 %v63
    %982 = vmatprep.subr.mxu0 %v60
    %983 = vmatpush1.msra.mxu0 %v59
    %984 = vmatprep.subr.mxu0 %v56
    %985 = vmatpush1.msra.mxu0 %v55
    %986 = vmatprep.subr.mxu0 %v52
    %987 = vmatpush1.msra.mxu0 %v51
    %988 = vmatprep.subr.mxu0 %v48
    %989 = vmatpush1.msra.mxu0 %v47
    %990 = vmatprep.subr.mxu0 %v44
    %991 = vmatpush1.msra.mxu0 %v43
    %992 = vmatprep.subr.mxu0 %v40
    %993 = vmatpush1.msra.mxu0 %v39
    %994 = vmatprep.subr.mxu0 0.0
    %995 = vmatpush2.msra.mxu0 0.0
    %996 = vmatprep.subr.mxu0 0.0
    %997 = vmatpush2.msra.mxu0 0.0
    %998 = vmatprep.subr.mxu0 0.0
    %999 = vmatpush2.msra.mxu0 0.0
    %1000 = vmatprep.subr.mxu0 0.0
    %1001 = vmatpush2.msra.mxu0 0.0
    %1002 = vmatprep.subr.mxu0 0.0
    %1003 = vmatpush2.msra.mxu0 0.0
    %1004 = vmatprep.subr.mxu0 0.0
    %1005 = vmatpush2.msra.mxu0 0.0
    %1006 = vmatprep.subr.mxu0 0.0
    %1007 = vmatpush2.msra.mxu0 0.0
    %1008 = vmatprep.subr.mxu0 0.0
    %1009 = vmatpush2.msra.mxu0 0.0
    %1010 = vmatprep.subr.mxu0 0.0
    %1011 = vmatpush2.msra.mxu0 0.0
    %1012 = vmatprep.subr.mxu0 0.0
    %1013 = vmatpush2.msra.mxu0 0.0
    %1014 = vmatprep.subr.mxu0 0.0
    %1015 = vmatpush2.msra.mxu0 0.0
    %1016 = vmatprep.subr.mxu0 0.0
    %1017 = vmatpush2.msra.mxu0 0.0
    %1018 = vmatprep.subr.mxu0 0.0
    %1019 = vmatpush2.msra.mxu0 0.0
    %1020 = vmatprep.subr.mxu0 0.0
    %1021 = vmatpush2.msra.mxu0 0.0
    %1022 = vmatprep.subr.mxu0 0.0
    %1023 = vmatpush2.msra.mxu0 0.0
    %1024 = vmatprep.subr.mxu0 0.0
    %1025 = vmatpush2.msra.mxu0 0.0
    %1026 = vmatprep.mubr.f32.mxu0 0.0
    %1027 = vmatmul.mubr.f32.gmra.mxu0 %v956
    %v1028 = vpop.f32.mrf.mxu0
    %v1029 = vadd.f32 %v958, %v1028
    %v1030 = vpop.f32.mrf.mxu0
    %v1031 = vadd.f32 %v959, %v1030
    %1032 = vdwg.mxu0
    %1033 = vmatprep.subr.mxu0 %v102
    %1034 = vmatpush1.msra.mxu0 %v101
    %1035 = vmatprep.subr.mxu0 %v98
    %1036 = vmatpush1.msra.mxu0 %v97
    %1037 = vmatprep.subr.mxu0 %v94
    %1038 = vmatpush1.msra.mxu0 %v93
    %1039 = vmatprep.subr.mxu0 %v90
    %1040 = vmatpush1.msra.mxu0 %v89
    %1041 = vmatprep.subr.mxu0 %v86
    %1042 = vmatpush1.msra.mxu0 %v85
    %1043 = vmatprep.subr.mxu0 %v82
    %1044 = vmatpush1.msra.mxu0 %v81
    %1045 = vmatprep.subr.mxu0 %v78
    %1046 = vmatpush1.msra.mxu0 %v77
    %1047 = vmatprep.subr.mxu0 %v74
    %1048 = vmatpush1.msra.mxu0 %v73
    %1049 = vmatprep.subr.mxu0 %v70
    %1050 = vmatpush1.msra.mxu0 %v69
    %1051 = vmatprep.subr.mxu0 %v66
    %1052 = vmatpush1.msra.mxu0 %v65
    %1053 = vmatprep.subr.mxu0 %v62
    %1054 = vmatpush1.msra.mxu0 %v61
    %1055 = vmatprep.subr.mxu0 %v58
    %1056 = vmatpush1.msra.mxu0 %v57
    %1057 = vmatprep.subr.mxu0 %v54
    %1058 = vmatpush1.msra.mxu0 %v53
    %1059 = vmatprep.subr.mxu0 %v50
    %1060 = vmatpush1.msra.mxu0 %v49
    %1061 = vmatprep.subr.mxu0 %v46
    %1062 = vmatpush1.msra.mxu0 %v45
    %1063 = vmatprep.subr.mxu0 %v42
    %1064 = vmatpush1.msra.mxu0 %v41
    %1065 = vmatprep.subr.mxu0 0.0
    %1066 = vmatpush2.msra.mxu0 0.0
    %1067 = vmatprep.subr.mxu0 0.0
    %1068 = vmatpush2.msra.mxu0 0.0
    %1069 = vmatprep.subr.mxu0 0.0
    %1070 = vmatpush2.msra.mxu0 0.0
    %1071 = vmatprep.subr.mxu0 0.0
    %1072 = vmatpush2.msra.mxu0 0.0
    %1073 = vmatprep.subr.mxu0 0.0
    %1074 = vmatpush2.msra.mxu0 0.0
    %1075 = vmatprep.subr.mxu0 0.0
    %1076 = vmatpush2.msra.mxu0 0.0
    %1077 = vmatprep.subr.mxu0 0.0
    %1078 = vmatpush2.msra.mxu0 0.0
    %1079 = vmatprep.subr.mxu0 0.0
    %1080 = vmatpush2.msra.mxu0 0.0
    %1081 = vmatprep.subr.mxu0 0.0
    %1082 = vmatpush2.msra.mxu0 0.0
    %1083 = vmatprep.subr.mxu0 0.0
    %1084 = vmatpush2.msra.mxu0 0.0
    %1085 = vmatprep.subr.mxu0 0.0
    %1086 = vmatpush2.msra.mxu0 0.0
    %1087 = vmatprep.subr.mxu0 0.0
    %1088 = vmatpush2.msra.mxu0 0.0
    %1089 = vmatprep.subr.mxu0 0.0
    %1090 = vmatpush2.msra.mxu0 0.0
    %1091 = vmatprep.subr.mxu0 0.0
    %1092 = vmatpush2.msra.mxu0 0.0
    %1093 = vmatprep.subr.mxu0 0.0
    %1094 = vmatpush2.msra.mxu0 0.0
    %1095 = vmatprep.subr.mxu0 0.0
    %1096 = vmatpush2.msra.mxu0 0.0
    %1097 = vmatprep.mubr.f32.mxu0 0.0
    %1098 = vmatmul.mubr.f32.gmra.mxu0 %v956
    %v1099 = vpop.f32.mrf.mxu0
    %v1100 = vadd.f32 %v960, %v1099
    %v1101 = vpop.f32.mrf.mxu0
    %v1102 = vadd.f32 %v961, %v1101
    %1103 = vdwg.mxu0
    %v1104 = vxor.u32 %v1029, 2147483648
    %v1105 = vxor.u32 %v1031, 2147483648
    %v1106 = vxor.u32 %v1100, 2147483648
    %v1107 = vmul.f32 %v1104, 1.442695
    %v1108 = vpow.pop %v1107
    %v1109 = vmul.f32 %v1105, 1.442695
    %v1110 = vpow.pop %v1109
    %v1111 = vmul.f32 %v1106, 1.442695
    %v1112 = vpow.pop %v1111
    %v1113 = vadd.f32 %v1108, 1.0
    %v1114 = vadd.f32 %v1110, 1.0
    %v1115 = vadd.f32 %v1112, 1.0
    %v1116 = vrcp.pop %v1113
    %v1117 = vmul.f32 1.0, %v1116
    %v1118 = vrcp.pop %v1114
    %v1119 = vmul.f32 1.0, %v1118
    %v1120 = vrcp.pop %v1115
    %v1121 = vmul.f32 1.0, %v1120
    %v1122 = vtanh.pop %v1102
    %v1123 = vmul.f32 %v1119, %v954
    %v1124 = vmul.f32 %v1117, %v1122
    %v1125 = vadd.f32 %v1123, %v1124
    %v1126 = vtanh.pop %v1125
    %v1127 = vmul.f32 %v1121, %v1126
    %s1128 = scalar_lea.vmem %s0, 192
    %v1129 = vld [vmem:[%s1128] sm:$0xff]
    %v1130 = vld [vmem:[%s1128 + $0x8] sm:$0xff]
    %v1131 = vld [vmem:[%s1128 + $0x10] sm:$0xff]
    %v1132 = vld [vmem:[%s1128 + $0x18] sm:$0xff]
    %1133 = vmatprep.subr.mxu0 %v100
    %1134 = vmatpush1.msra.mxu0 %v99
    %1135 = vmatprep.subr.mxu0 %v96
    %1136 = vmatpush1.msra.mxu0 %v95
    %1137 = vmatprep.subr.mxu0 %v92
    %1138 = vmatpush1.msra.mxu0 %v91
    %1139 = vmatprep.subr.mxu0 %v88
    %1140 = vmatpush1.msra.mxu0 %v87
    %1141 = vmatprep.subr.mxu0 %v84
    %1142 = vmatpush1.msra.mxu0 %v83
    %1143 = vmatprep.subr.mxu0 %v80
    %1144 = vmatpush1.msra.mxu0 %v79
    %1145 = vmatprep.subr.mxu0 %v76
    %1146 = vmatpush1.msra.mxu0 %v75
    %1147 = vmatprep.subr.mxu0 %v72
    %1148 = vmatpush1.msra.mxu0 %v71
    %1149 = vmatprep.subr.mxu0 %v68
    %1150 = vmatpush1.msra.mxu0 %v67
    %1151 = vmatprep.subr.mxu0 %v64
    %1152 = vmatpush1.msra.mxu0 %v63
    %1153 = vmatprep.subr.mxu0 %v60
    %1154 = vmatpush1.msra.mxu0 %v59
    %1155 = vmatprep.subr.mxu0 %v56
    %1156 = vmatpush1.msra.mxu0 %v55
    %1157 = vmatprep.subr.mxu0 %v52
    %1158 = vmatpush1.msra.mxu0 %v51
    %1159 = vmatprep.subr.mxu0 %v48
    %1160 = vmatpush1.msra.mxu0 %v47
    %1161 = vmatprep.subr.mxu0 %v44
    %1162 = vmatpush1.msra.mxu0 %v43
    %1163 = vmatprep.subr.mxu0 %v40
    %1164 = vmatpush1.msra.mxu0 %v39
    %1165 = vmatprep.subr.mxu0 0.0
    %1166 = vmatpush2.msra.mxu0 0.0
    %1167 = vmatprep.subr.mxu0 0.0
    %1168 = vmatpush2.msra.mxu0 0.0
    %1169 = vmatprep.subr.mxu0 0.0
    %1170 = vmatpush2.msra.mxu0 0.0
    %1171 = vmatprep.subr.mxu0 0.0
    %1172 = vmatpush2.msra.mxu0 0.0
    %1173 = vmatprep.subr.mxu0 0.0
    %1174 = vmatpush2.msra.mxu0 0.0
    %1175 = vmatprep.subr.mxu0 0.0
    %1176 = vmatpush2.msra.mxu0 0.0
    %1177 = vmatprep.subr.mxu0 0.0
    %1178 = vmatpush2.msra.mxu0 0.0
    %1179 = vmatprep.subr.mxu0 0.0
    %1180 = vmatpush2.msra.mxu0 0.0
    %1181 = vmatprep.subr.mxu0 0.0
    %1182 = vmatpush2.msra.mxu0 0.0
    %1183 = vmatprep.subr.mxu0 0.0
    %1184 = vmatpush2.msra.mxu0 0.0
    %1185 = vmatprep.subr.mxu0 0.0
    %1186 = vmatpush2.msra.mxu0 0.0
    %1187 = vmatprep.subr.mxu0 0.0
    %1188 = vmatpush2.msra.mxu0 0.0
    %1189 = vmatprep.subr.mxu0 0.0
    %1190 = vmatpush2.msra.mxu0 0.0
    %1191 = vmatprep.subr.mxu0 0.0
    %1192 = vmatpush2.msra.mxu0 0.0
    %1193 = vmatprep.subr.mxu0 0.0
    %1194 = vmatpush2.msra.mxu0 0.0
    %1195 = vmatprep.subr.mxu0 0.0
    %1196 = vmatpush2.msra.mxu0 0.0
    %1197 = vmatprep.mubr.f32.mxu0 0.0
    %1198 = vmatmul.mubr.f32.gmra.mxu0 %v1127
    %v1199 = vpop.f32.mrf.mxu0
    %v1200 = vadd.f32 %v1129, %v1199
    %v1201 = vpop.f32.mrf.mxu0
    %v1202 = vadd.f32 %v1130, %v1201
    %1203 = vdwg.mxu0
    %1204 = vmatprep.subr.mxu0 %v102
    %1205 = vmatpush1.msra.mxu0 %v101
    %1206 = vmatprep.subr.mxu0 %v98
    %1207 = vmatpush1.msra.mxu0 %v97
    %1208 = vmatprep.subr.mxu0 %v94
    %1209 = vmatpush1.msra.mxu0 %v93
    %1210 = vmatprep.subr.mxu0 %v90
    %1211 = vmatpush1.msra.mxu0 %v89
    %1212 = vmatprep.subr.mxu0 %v86
    %1213 = vmatpush1.msra.mxu0 %v85
    %1214 = vmatprep.subr.mxu0 %v82
    %1215 = vmatpush1.msra.mxu0 %v81
    %1216 = vmatprep.subr.mxu0 %v78
    %1217 = vmatpush1.msra.mxu0 %v77
    %1218 = vmatprep.subr.mxu0 %v74
    %1219 = vmatpush1.msra.mxu0 %v73
    %1220 = vmatprep.subr.mxu0 %v70
    %1221 = vmatpush1.msra.mxu0 %v69
    %1222 = vmatprep.subr.mxu0 %v66
    %1223 = vmatpush1.msra.mxu0 %v65
    %1224 = vmatprep.subr.mxu0 %v62
    %1225 = vmatpush1.msra.mxu0 %v61
    %1226 = vmatprep.subr.mxu0 %v58
    %1227 = vmatpush1.msra.mxu0 %v57
    %1228 = vmatprep.subr.mxu0 %v54
    %1229 = vmatpush1.msra.mxu0 %v53
    %1230 = vmatprep.subr.mxu0 %v50
    %1231 = vmatpush1.msra.mxu0 %v49
    %1232 = vmatprep.subr.mxu0 %v46
    %1233 = vmatpush1.msra.mxu0 %v45
    %1234 = vmatprep.subr.mxu0 %v42
    %1235 = vmatpush1.msra.mxu0 %v41
    %1236 = vmatprep.subr.mxu0 0.0
    %1237 = vmatpush2.msra.mxu0 0.0
    %1238 = vmatprep.subr.mxu0 0.0
    %1239 = vmatpush2.msra.mxu0 0.0
    %1240 = vmatprep.subr.mxu0 0.0
    %1241 = vmatpush2.msra.mxu0 0.0
    %1242 = vmatprep.subr.mxu0 0.0
    %1243 = vmatpush2.msra.mxu0 0.0
    %1244 = vmatprep.subr.mxu0 0.0
    %1245 = vmatpush2.msra.mxu0 0.0
    %1246 = vmatprep.subr.mxu0 0.0
    %1247 = vmatpush2.msra.mxu0 0.0
    %1248 = vmatprep.subr.mxu0 0.0
    %1249 = vmatpush2.msra.mxu0 0.0
    %1250 = vmatprep.subr.mxu0 0.0
    %1251 = vmatpush2.msra.mxu0 0.0
    %1252 = vmatprep.subr.mxu0 0.0
    %1253 = vmatpush2.msra.mxu0 0.0
    %1254 = vmatprep.subr.mxu0 0.0
    %1255 = vmatpush2.msra.mxu0 0.0
    %1256 = vmatprep.subr.mxu0 0.0
    %1257 = vmatpush2.msra.mxu0 0.0
    %1258 = vmatprep.subr.mxu0 0.0
    %1259 = vmatpush2.msra.mxu0 0.0
    %1260 = vmatprep.subr.mxu0 0.0
    %1261 = vmatpush2.msra.mxu0 0.0
    %1262 = vmatprep.subr.mxu0 0.0
    %1263 = vmatpush2.msra.mxu0 0.0
    %1264 = vmatprep.subr.mxu0 0.0
    %1265 = vmatpush2.msra.mxu0 0.0
    %1266 = vmatprep.subr.mxu0 0.0
    %1267 = vmatpush2.msra.mxu0 0.0
    %1268 = vmatprep.mubr.f32.mxu0 0.0
    %1269 = vmatmul.mubr.f32.gmra.mxu0 %v1127
    %v1270 = vpop.f32.mrf.mxu0
    %v1271 = vadd.f32 %v1131, %v1270
    %v1272 = vpop.f32.mrf.mxu0
    %v1273 = vadd.f32 %v1132, %v1272
    %1274 = vdwg.mxu0
    %v1275 = vxor.u32 %v1200, 2147483648
    %v1276 = vxor.u32 %v1202, 2147483648
    %v1277 = vxor.u32 %v1271, 2147483648
    %v1278 = vmul.f32 %v1275, 1.442695
    %v1279 = vpow.pop %v1278
    %v1280 = vmul.f32 %v1276, 1.442695
    %v1281 = vpow.pop %v1280
    %v1282 = vmul.f32 %v1277, 1.442695
    %v1283 = vpow.pop %v1282
    %v1284 = vadd.f32 %v1279, 1.0
    %v1285 = vadd.f32 %v1281, 1.0
    %v1286 = vadd.f32 %v1283, 1.0
    %v1287 = vrcp.pop %v1284
    %v1288 = vmul.f32 1.0, %v1287
    %v1289 = vrcp.pop %v1285
    %v1290 = vmul.f32 1.0, %v1289
    %v1291 = vrcp.pop %v1286
    %v1292 = vmul.f32 1.0, %v1291
    %v1293 = vtanh.pop %v1273
    %v1294 = vmul.f32 %v1290, %v1125
    %v1295 = vmul.f32 %v1288, %v1293
    %v1296 = vadd.f32 %v1294, %v1295
    %v1297 = vtanh.pop %v1296
    %v1298 = vmul.f32 %v1292, %v1297
    %s1299 = scalar_lea.vmem %s0, 224
    %v1300 = vld [vmem:[%s1299] sm:$0xff]
    %v1301 = vld [vmem:[%s1299 + $0x8] sm:$0xff]
    %v1302 = vld [vmem:[%s1299 + $0x10] sm:$0xff]
    %v1303 = vld [vmem:[%s1299 + $0x18] sm:$0xff]
    %1304 = vmatprep.subr.mxu0 %v100
    %1305 = vmatpush1.msra.mxu0 %v99
    %1306 = vmatprep.subr.mxu0 %v96
    %1307 = vmatpush1.msra.mxu0 %v95
    %1308 = vmatprep.subr.mxu0 %v92
    %1309 = vmatpush1.msra.mxu0 %v91
    %1310 = vmatprep.subr.mxu0 %v88
    %1311 = vmatpush1.msra.mxu0 %v87
    %1312 = vmatprep.subr.mxu0 %v84
    %1313 = vmatpush1.msra.mxu0 %v83
    %1314 = vmatprep.subr.mxu0 %v80
    %1315 = vmatpush1.msra.mxu0 %v79
    %1316 = vmatprep.subr.mxu0 %v76
    %1317 = vmatpush1.msra.mxu0 %v75
    %1318 = vmatprep.subr.mxu0 %v72
    %1319 = vmatpush1.msra.mxu0 %v71
    %1320 = vmatprep.subr.mxu0 %v68
    %1321 = vmatpush1.msra.mxu0 %v67
    %1322 = vmatprep.subr.mxu0 %v64
    %1323 = vmatpush1.msra.mxu0 %v63
    %1324 = vmatprep.subr.mxu0 %v60
    %1325 = vmatpush1.msra.mxu0 %v59
    %1326 = vmatprep.subr.mxu0 %v56
    %1327 = vmatpush1.msra.mxu0 %v55
    %1328 = vmatprep.subr.mxu0 %v52
    %1329 = vmatpush1.msra.mxu0 %v51
    %1330 = vmatprep.subr.mxu0 %v48
    %1331 = vmatpush1.msra.mxu0 %v47
    %1332 = vmatprep.subr.mxu0 %v44
    %1333 = vmatpush1.msra.mxu0 %v43
    %1334 = vmatprep.subr.mxu0 %v40
    %1335 = vmatpush1.msra.mxu0 %v39
    %1336 = vmatprep.subr.mxu0 0.0
    %1337 = vmatpush2.msra.mxu0 0.0
    %1338 = vmatprep.subr.mxu0 0.0
    %1339 = vmatpush2.msra.mxu0 0.0
    %1340 = vmatprep.subr.mxu0 0.0
    %1341 = vmatpush2.msra.mxu0 0.0
    %1342 = vmatprep.subr.mxu0 0.0
    %1343 = vmatpush2.msra.mxu0 0.0
    %1344 = vmatprep.subr.mxu0 0.0
    %1345 = vmatpush2.msra.mxu0 0.0
    %1346 = vmatprep.subr.mxu0 0.0
    %1347 = vmatpush2.msra.mxu0 0.0
    %1348 = vmatprep.subr.mxu0 0.0
    %1349 = vmatpush2.msra.mxu0 0.0
    %1350 = vmatprep.subr.mxu0 0.0
    %1351 = vmatpush2.msra.mxu0 0.0
    %1352 = vmatprep.subr.mxu0 0.0
    %1353 = vmatpush2.msra.mxu0 0.0
    %1354 = vmatprep.subr.mxu0 0.0
    %1355 = vmatpush2.msra.mxu0 0.0
    %1356 = vmatprep.subr.mxu0 0.0
    %1357 = vmatpush2.msra.mxu0 0.0
    %1358 = vmatprep.subr.mxu0 0.0
    %1359 = vmatpush2.msra.mxu0 0.0
    %1360 = vmatprep.subr.mxu0 0.0
    %1361 = vmatpush2.msra.mxu0 0.0
    %1362 = vmatprep.subr.mxu0 0.0
    %1363 = vmatpush2.msra.mxu0 0.0
    %1364 = vmatprep.subr.mxu0 0.0
    %1365 = vmatpush2.msra.mxu0 0.0
    %1366 = vmatprep.subr.mxu0 0.0
    %1367 = vmatpush2.msra.mxu0 0.0
    %1368 = vmatprep.mubr.f32.mxu0 0.0
    %1369 = vmatmul.mubr.f32.gmra.mxu0 %v1298
    %v1370 = vpop.f32.mrf.mxu0
    %v1371 = vadd.f32 %v1300, %v1370
    %v1372 = vpop.f32.mrf.mxu0
    %v1373 = vadd.f32 %v1301, %v1372
    %1374 = vdwg.mxu0
    %1375 = vmatprep.subr.mxu0 %v102
    %1376 = vmatpush1.msra.mxu0 %v101
    %1377 = vmatprep.subr.mxu0 %v98
    %1378 = vmatpush1.msra.mxu0 %v97
    %1379 = vmatprep.subr.mxu0 %v94
    %1380 = vmatpush1.msra.mxu0 %v93
    %1381 = vmatprep.subr.mxu0 %v90
    %1382 = vmatpush1.msra.mxu0 %v89
    %1383 = vmatprep.subr.mxu0 %v86
    %1384 = vmatpush1.msra.mxu0 %v85
    %1385 = vmatprep.subr.mxu0 %v82
    %1386 = vmatpush1.msra.mxu0 %v81
    %1387 = vmatprep.subr.mxu0 %v78
    %1388 = vmatpush1.msra.mxu0 %v77
    %1389 = vmatprep.subr.mxu0 %v74
    %1390 = vmatpush1.msra.mxu0 %v73
    %1391 = vmatprep.subr.mxu0 %v70
    %1392 = vmatpush1.msra.mxu0 %v69
    %1393 = vmatprep.subr.mxu0 %v66
    %1394 = vmatpush1.msra.mxu0 %v65
    %1395 = vmatprep.subr.mxu0 %v62
    %1396 = vmatpush1.msra.mxu0 %v61
    %1397 = vmatprep.subr.mxu0 %v58
    %1398 = vmatpush1.msra.mxu0 %v57
    %1399 = vmatprep.subr.mxu0 %v54
    %1400 = vmatpush1.msra.mxu0 %v53
    %1401 = vmatprep.subr.mxu0 %v50
    %1402 = vmatpush1.msra.mxu0 %v49
    %1403 = vmatprep.subr.mxu0 %v46
    %1404 = vmatpush1.msra.mxu0 %v45
    %1405 = vmatprep.subr.mxu0 %v42
    %1406 = vmatpush1.msra.mxu0 %v41
    %1407 = vmatprep.subr.mxu0 0.0
    %1408 = vmatpush2.msra.mxu0 0.0
    %1409 = vmatprep.subr.mxu0 0.0
    %1410 = vmatpush2.msra.mxu0 0.0
    %1411 = vmatprep.subr.mxu0 0.0
    %1412 = vmatpush2.msra.mxu0 0.0
    %1413 = vmatprep.subr.mxu0 0.0
    %1414 = vmatpush2.msra.mxu0 0.0
    %1415 = vmatprep.subr.mxu0 0.0
    %1416 = vmatpush2.msra.mxu0 0.0
    %1417 = vmatprep.subr.mxu0 0.0
    %1418 = vmatpush2.msra.mxu0 0.0
    %1419 = vmatprep.subr.mxu0 0.0
    %1420 = vmatpush2.msra.mxu0 0.0
    %1421 = vmatprep.subr.mxu0 0.0
    %1422 = vmatpush2.msra.mxu0 0.0
    %1423 = vmatprep.subr.mxu0 0.0
    %1424 = vmatpush2.msra.mxu0 0.0
    %1425 = vmatprep.subr.mxu0 0.0
    %1426 = vmatpush2.msra.mxu0 0.0
    %1427 = vmatprep.subr.mxu0 0.0
    %1428 = vmatpush2.msra.mxu0 0.0
    %1429 = vmatprep.subr.mxu0 0.0
    %1430 = vmatpush2.msra.mxu0 0.0
    %1431 = vmatprep.subr.mxu0 0.0
    %1432 = vmatpush2.msra.mxu0 0.0
    %1433 = vmatprep.subr.mxu0 0.0
    %1434 = vmatpush2.msra.mxu0 0.0
    %1435 = vmatprep.subr.mxu0 0.0
    %1436 = vmatpush2.msra.mxu0 0.0
    %1437 = vmatprep.subr.mxu0 0.0
    %1438 = vmatpush2.msra.mxu0 0.0
    %1439 = vmatprep.mubr.f32.mxu0 0.0
    %1440 = vmatmul.mubr.f32.gmra.mxu0 %v1298
    %v1441 = vpop.f32.mrf.mxu0
    %v1442 = vadd.f32 %v1302, %v1441
    %v1443 = vpop.f32.mrf.mxu0
    %v1444 = vadd.f32 %v1303, %v1443
    %1445 = vdwg.mxu0
    %v1446 = vxor.u32 %v1371, 2147483648
    %v1447 = vxor.u32 %v1373, 2147483648
    %v1448 = vxor.u32 %v1442, 2147483648
    %v1449 = vmul.f32 %v1446, 1.442695
    %v1450 = vpow.pop %v1449
    %v1451 = vmul.f32 %v1447, 1.442695
    %v1452 = vpow.pop %v1451
    %v1453 = vmul.f32 %v1448, 1.442695
    %v1454 = vpow.pop %v1453
    %v1455 = vadd.f32 %v1450, 1.0
    %v1456 = vadd.f32 %v1452, 1.0
    %v1457 = vadd.f32 %v1454, 1.0
    %v1458 = vrcp.pop %v1455
    %v1459 = vmul.f32 1.0, %v1458
    %v1460 = vrcp.pop %v1456
    %v1461 = vmul.f32 1.0, %v1460
    %v1462 = vrcp.pop %v1457
    %v1463 = vmul.f32 1.0, %v1462
    %v1464 = vtanh.pop %v1444
    %v1465 = vmul.f32 %v1461, %v1296
    %v1466 = vmul.f32 %v1459, %v1464
    %v1467 = vadd.f32 %v1465, %v1466
    %v1468 = vtanh.pop %v1467
    %v1469 = vmul.f32 %v1463, %v1468
    %v1470 = vld [vmem:[%s2] sm:$0xff]
    %v1471 = vld [vmem:[%s2 + $0x8] sm:$0xff]
    %v1472 = vld [vmem:[%s2 + $0x10] sm:$0xff]
    %v1473 = vld [vmem:[%s2 + $0x18] sm:$0xff]
    %v1474 = vld [vmem:[%s2 + $0x20] sm:$0xff]
    %v1475 = vld [vmem:[%s2 + $0x28] sm:$0xff]
    %v1476 = vld [vmem:[%s2 + $0x30] sm:$0xff]
    %v1477 = vld [vmem:[%s2 + $0x38] sm:$0xff]
    %v1478 = vld [vmem:[%s2 + $0x40] sm:$0xff]
    %v1479 = vld [vmem:[%s2 + $0x48] sm:$0xff]
    %v1480 = vld [vmem:[%s2 + $0x50] sm:$0xff]
    %v1481 = vld [vmem:[%s2 + $0x58] sm:$0xff]
    %v1482 = vld [vmem:[%s2 + $0x60] sm:$0xff]
    %v1483 = vld [vmem:[%s2 + $0x68] sm:$0xff]
    %v1484 = vld [vmem:[%s2 + $0x70] sm:$0xff]
    %v1485 = vld [vmem:[%s2 + $0x78] sm:$0xff]
    %v1486 = vld [vmem:[%s3] sm:$0x1]
    %v1488 = vlaneseq
    %v1489 = vshrl.u32 %v1488, 7
    %v1490 = vsub.s32 0, %v1489
    %v1491 = vrot.slane %v1486, %v1490
    %1493 = vmatprep.subr.mxu0 0.0
    %1494 = vmatpush1.msra.mxu0 %v1485
    %1495 = vmatprep.subr.mxu0 0.0
    %1496 = vmatpush1.msra.mxu0 %v1484
    %1497 = vmatprep.subr.mxu0 0.0
    %1498 = vmatpush1.msra.mxu0 %v1483
    %1499 = vmatprep.subr.mxu0 0.0
    %1500 = vmatpush1.msra.mxu0 %v1482
    %1501 = vmatprep.subr.mxu0 0.0
    %1502 = vmatpush1.msra.mxu0 %v1481
    %1503 = vmatprep.subr.mxu0 0.0
    %1504 = vmatpush1.msra.mxu0 %v1480
    %1505 = vmatprep.subr.mxu0 0.0
    %1506 = vmatpush1.msra.mxu0 %v1479
    %1507 = vmatprep.subr.mxu0 0.0
    %1508 = vmatpush1.msra.mxu0 %v1478
    %1509 = vmatprep.subr.mxu0 0.0
    %1510 = vmatpush1.msra.mxu0 %v1477
    %1511 = vmatprep.subr.mxu0 0.0
    %1512 = vmatpush1.msra.mxu0 %v1476
    %1513 = vmatprep.subr.mxu0 0.0
    %1514 = vmatpush1.msra.mxu0 %v1475
    %1515 = vmatprep.subr.mxu0 0.0
    %1516 = vmatpush1.msra.mxu0 %v1474
    %1517 = vmatprep.subr.mxu0 0.0
    %1518 = vmatpush1.msra.mxu0 %v1473
    %1519 = vmatprep.subr.mxu0 0.0
    %1520 = vmatpush1.msra.mxu0 %v1472
    %1521 = vmatprep.subr.mxu0 0.0
    %1522 = vmatpush1.msra.mxu0 %v1471
    %1523 = vmatprep.subr.mxu0 0.0
    %1524 = vmatpush1.msra.mxu0 %v1470
    %1525 = vmatprep.subr.mxu0 0.0
    %1526 = vmatpush2.msra.mxu0 0.0
    %1527 = vmatprep.subr.mxu0 0.0
    %1528 = vmatpush2.msra.mxu0 0.0
    %1529 = vmatprep.subr.mxu0 0.0
    %1530 = vmatpush2.msra.mxu0 0.0
    %1531 = vmatprep.subr.mxu0 0.0
    %1532 = vmatpush2.msra.mxu0 0.0
    %1533 = vmatprep.subr.mxu0 0.0
    %1534 = vmatpush2.msra.mxu0 0.0
    %1535 = vmatprep.subr.mxu0 0.0
    %1536 = vmatpush2.msra.mxu0 0.0
    %1537 = vmatprep.subr.mxu0 0.0
    %1538 = vmatpush2.msra.mxu0 0.0
    %1539 = vmatprep.subr.mxu0 0.0
    %1540 = vmatpush2.msra.mxu0 0.0
    %1541 = vmatprep.subr.mxu0 0.0
    %1542 = vmatpush2.msra.mxu0 0.0
    %1543 = vmatprep.subr.mxu0 0.0
    %1544 = vmatpush2.msra.mxu0 0.0
    %1545 = vmatprep.subr.mxu0 0.0
    %1546 = vmatpush2.msra.mxu0 0.0
    %1547 = vmatprep.subr.mxu0 0.0
    %1548 = vmatpush2.msra.mxu0 0.0
    %1549 = vmatprep.subr.mxu0 0.0
    %1550 = vmatpush2.msra.mxu0 0.0
    %1551 = vmatprep.subr.mxu0 0.0
    %1552 = vmatpush2.msra.mxu0 0.0
    %1553 = vmatprep.subr.mxu0 0.0
    %1554 = vmatpush2.msra.mxu0 0.0
    %1555 = vmatprep.subr.mxu0 0.0
    %1556 = vmatpush2.msra.mxu0 0.0
    %1557 = vmatprep.mubr.f32.mxu0 0.0
    %1558 = vmatmul.mubr.f32.gmra.mxu0 %v1469
    %v1559 = vpop.f32.mrf.mxu0
    %v1560 = vadd.f32 %v1491, %v1559
    %v1561 = vpop.f32.mrf.mxu0
    %1562 = vdwg.mxu0
    %vm1563 = vcmp.gt.f32.partialorder %v1560, 0.0
    %v1564 = vmul.f32 %v1560, 0.01
    %v1565 = vsel %vm1563, %v1560, %v1564
    %v1566 = vld [vmem:[%s4] sm:$0xff]
    %v1567 = vld [vmem:[%s4 + $0x8] sm:$0xff]
    %v1568 = vld [vmem:[%s4 + $0x10] sm:$0xff]
    %v1569 = vld [vmem:[%s4 + $0x18] sm:$0xff]
    %v1570 = vld [vmem:[%s4 + $0x20] sm:$0xff]
    %v1571 = vld [vmem:[%s4 + $0x28] sm:$0xff]
    %v1572 = vld [vmem:[%s4 + $0x30] sm:$0xff]
    %v1573 = vld [vmem:[%s4 + $0x38] sm:$0xff]
    %v1574 = vld [vmem:[#allocation2] sm:$0x1]
    %v1576 = vlaneseq
    %v1577 = vshrl.u32 %v1576, 7
    %v1578 = vsub.s32 0, %v1577
    %v1579 = vrot.slane %v1574, %v1578
    %vm1581 = vcmask 523264
    %v1583 = vsel %vm1581, %v1565, 0
    %1585 = vmatprep.subr.mxu0 0.0
    %1586 = vmatpush1.msra.mxu0 0.0
    %1587 = vmatprep.subr.mxu0 0.0
    %1588 = vmatpush1.msra.mxu0 0.0
    %1589 = vmatprep.subr.mxu0 0.0
    %1590 = vmatpush1.msra.mxu0 0.0
    %1591 = vmatprep.subr.mxu0 0.0
    %1592 = vmatpush1.msra.mxu0 0.0
    %1593 = vmatprep.subr.mxu0 0.0
    %1594 = vmatpush1.msra.mxu0 0.0
    %1595 = vmatprep.subr.mxu0 0.0
    %1596 = vmatpush1.msra.mxu0 0.0
    %1597 = vmatprep.subr.mxu0 0.0
    %1598 = vmatpush1.msra.mxu0 0.0
    %1599 = vmatprep.subr.mxu0 0.0
    %1600 = vmatpush1.msra.mxu0 0.0
    %1601 = vmatprep.subr.mxu0 0.0
    %1602 = vmatpush1.msra.mxu0 %v1573
    %1603 = vmatprep.subr.mxu0 0.0
    %1604 = vmatpush1.msra.mxu0 %v1572
    %1605 = vmatprep.subr.mxu0 0.0
    %1606 = vmatpush1.msra.mxu0 %v1571
    %1607 = vmatprep.subr.mxu0 0.0
    %1608 = vmatpush1.msra.mxu0 %v1570
    %1609 = vmatprep.subr.mxu0 0.0
    %1610 = vmatpush1.msra.mxu0 %v1569
    %1611 = vmatprep.subr.mxu0 0.0
    %1612 = vmatpush1.msra.mxu0 %v1568
    %1613 = vmatprep.subr.mxu0 0.0
    %1614 = vmatpush1.msra.mxu0 %v1567
    %1615 = vmatprep.subr.mxu0 0.0
    %1616 = vmatpush1.msra.mxu0 %v1566
    %1617 = vmatprep.subr.mxu0 0.0
    %1618 = vmatpush2.msra.mxu0 0.0
    %1619 = vmatprep.subr.mxu0 0.0
    %1620 = vmatpush2.msra.mxu0 0.0
    %1621 = vmatprep.subr.mxu0 0.0
    %1622 = vmatpush2.msra.mxu0 0.0
    %1623 = vmatprep.subr.mxu0 0.0
    %1624 = vmatpush2.msra.mxu0 0.0
    %1625 = vmatprep.subr.mxu0 0.0
    %1626 = vmatpush2.msra.mxu0 0.0
    %1627 = vmatprep.subr.mxu0 0.0
    %1628 = vmatpush2.msra.mxu0 0.0
    %1629 = vmatprep.subr.mxu0 0.0
    %1630 = vmatpush2.msra.mxu0 0.0
    %1631 = vmatprep.subr.mxu0 0.0
    %1632 = vmatpush2.msra.mxu0 0.0
    %1633 = vmatprep.subr.mxu0 0.0
    %1634 = vmatpush2.msra.mxu0 0.0
    %1635 = vmatprep.subr.mxu0 0.0
    %1636 = vmatpush2.msra.mxu0 0.0
    %1637 = vmatprep.subr.mxu0 0.0
    %1638 = vmatpush2.msra.mxu0 0.0
    %1639 = vmatprep.subr.mxu0 0.0
    %1640 = vmatpush2.msra.mxu0 0.0
    %1641 = vmatprep.subr.mxu0 0.0
    %1642 = vmatpush2.msra.mxu0 0.0
    %1643 = vmatprep.subr.mxu0 0.0
    %1644 = vmatpush2.msra.mxu0 0.0
    %1645 = vmatprep.subr.mxu0 0.0
    %1646 = vmatpush2.msra.mxu0 0.0
    %1647 = vmatprep.subr.mxu0 0.0
    %1648 = vmatpush2.msra.mxu0 0.0
    %1649 = vmatprep.mubr.f32.mxu0 0.0
    %1650 = vmatmul.mubr.f32.gmra.mxu0 %v1583
    %v1651 = vpop.f32.mrf.mxu0
    %v1652 = vadd.f32 %v1579, %v1651
    %v1653 = vpop.f32.mrf.mxu0
    %1654 = vdwg.mxu0
    %vm1655 = vcmask 7168
    %1656 = vst.msk [vmem:[%s6] sm:$0xff] %vm1655, %v1652
    // Predicated region
    $region30: #{tpu_custom_call.1} parent=1 // pred_check
      _
    $region31: #{tpu_custom_call.1} parent=1 // pred_check_branch
      %1658 = sbr.rel (0) target = $region33
    $region32: #{tpu_custom_call.1} parent=1 // pred_region
      _
    $region33: #{tpu_custom_call.1} parent=1 // pred_fallthru
      _
    // Predicated region
    $region34: #{tpu_custom_call.1} parent=1 // pred_check
      _
    $region35: #{tpu_custom_call.1} parent=1 // pred_check_branch
      %1660 = sbr.rel (0) target = $region37
    $region36: #{tpu_custom_call.1} parent=1 // pred_region
      _
    $region37: #{tpu_custom_call.1} parent=1 // pred_fallthru
      _
    %1661 = vsyncpa [#allocation4], 1

</llo_original>
